<compile_context>
chip_gen: v6e
topology: v6e:2x2x1
jax: 0.10.0
libtpu: 0.0.40
codegen_flags: <defaults>
</compile_context>

<pallas_src>
import functools

import jax
import jax.numpy as jnp
from jax.experimental import pallas as pl
from jax.experimental.pallas import tpu as pltpu


_LN_EPS = 1e-5  # PyTorch nn.LayerNorm default
_SQRT_HALF = 0.7071067811865476


def _erf(x):
    # Abramowitz & Stegun 7.1.26 (max abs error 1.5e-7); uses only exp + VPU ops.
    a1, a2, a3, a4, a5 = 0.254829592, -0.284496736, 1.421413741, -1.453152027, 1.061405429
    p = 0.3275911
    ax = jnp.abs(x)
    t = 1.0 / (1.0 + p * ax)
    poly = ((((a5 * t + a4) * t + a3) * t + a2) * t + a1) * t
    y = 1.0 - poly * jnp.exp(-ax * ax)
    return jnp.where(x < 0.0, -y, y)


def _gelu_exact(x):
    # PyTorch nn.GELU() default ("none" approximation): 0.5*x*(1+erf(x/sqrt(2)))
    return 0.5 * x * (1.0 + _erf(x * _SQRT_HALF))


def _layer_norm(h, gamma, beta):
    mean = jnp.mean(h, axis=-1, keepdims=True)
    c = h - mean
    var = jnp.mean(c * c, axis=-1, keepdims=True)
    return c * jax.lax.rsqrt(var + _LN_EPS) * gamma + beta


def _audio_proj_kernel(x_ref,
                       w1_ref, b1_ref, g1_ref, t1_ref,
                       w2_ref, b2_ref, g2_ref, t2_ref,
                       w3_ref, b3_ref, g3_ref, t3_ref,
                       o_ref):
    dot = functools.partial(jnp.dot,
                            preferred_element_type=jnp.float32,
                            precision=jax.lax.Precision.HIGHEST)
    x = x_ref[...].astype(jnp.float32)

    h = dot(x, w1_ref[...]) + b1_ref[...]
    h = _gelu_exact(h)
    h = _layer_norm(h, g1_ref[...], t1_ref[...])

    h = dot(h, w2_ref[...]) + b2_ref[...]
    h = _gelu_exact(h)
    h = _layer_norm(h, g2_ref[...], t2_ref[...])

    h = dot(h, w3_ref[...]) + b3_ref[...]
    h = _layer_norm(h, g3_ref[...], t3_ref[...])

    o_ref[...] = h.astype(o_ref.dtype)


def _round_up(a, b):
    return (a + b - 1) // b * b


def audio_projection(x, params, *, block_rows=256):
    """Apply AudioProjectionLayers. x: (..., input_dim) float32."""
    (w1, b1, g1, t1, w2, b2, g2, t2, w3, b3, g3, t3) = params
    in_dim = x.shape[-1]
    hid_dim = w1.shape[1]
    out_dim = w3.shape[1]
    assert w1.shape == (in_dim, hid_dim)
    assert w2.shape == (hid_dim, hid_dim)
    assert w3.shape == (hid_dim, out_dim)

    lead = x.shape[:-1]
    x2d = x.reshape(-1, in_dim)            # lane-dense (rows, features) view
    n = x2d.shape[0]

    # Row tile: multiple of 8 sublanes, capped at (padded) row count.
    tm = max(8, min(_round_up(block_rows, 8), _round_up(n, 8)))
    pad_n = _round_up(n, tm)
    if pad_n != n:
        x2d = jnp.pad(x2d, ((0, pad_n - n), (0, 0)))

    # Params as lane-dense 2-D (1, dim) rows so they live cleanly in VMEM.
    row = lambda v: v.reshape(1, -1)
    param_args = (w1, row(b1), row(g1), row(t1),
                  w2, row(b2), row(g2), row(t2),
                  w3, row(b3), row(g3), row(t3))

    x_spec = pl.BlockSpec((tm, in_dim), lambda i: (i, 0))
    full = lambda a: pl.BlockSpec(a.shape, lambda i: (0, 0))  # resident across grid
    o_spec = pl.BlockSpec((tm, out_dim), lambda i: (i, 0))

    out2d = pl.pallas_call(
        _audio_proj_kernel,
        out_shape=jax.ShapeDtypeStruct((pad_n, out_dim), x.dtype),
        grid=(pad_n // tm,),
        in_specs=[x_spec] + [full(a) for a in param_args],
        out_specs=o_spec,
        compiler_params=pltpu.CompilerParams(
            dimension_semantics=("parallel",),
            vmem_limit_bytes=32 * 1024 * 1024,
        ),
    )(x2d, *param_args)

    return out2d[:n].reshape(*lead, out_dim)


def init_params(key, input_dim=768, hidden_dim=1024, output_dim=768):
    """Deterministic init mirroring PyTorch defaults (Linear U(-k,k), LN ones/zeros)."""
    ks = jax.random.split(key, 6)

    def linear(kw, kb, fan_in, fan_out):
        bound = 1.0 / jnp.sqrt(jnp.float32(fan_in))
        w = jax.random.uniform(kw, (fan_in, fan_out), jnp.float32, -bound, bound)
        b = jax.random.uniform(kb, (fan_out,), jnp.float32, -bound, bound)
        return w, b

    w1, b1 = linear(ks[0], ks[1], input_dim, hidden_dim)
    w2, b2 = linear(ks[2], ks[3], hidden_dim, hidden_dim)
    w3, b3 = linear(ks[4], ks[5], hidden_dim, output_dim)
    g1, t1 = jnp.ones((hidden_dim,), jnp.float32), jnp.zeros((hidden_dim,), jnp.float32)
    g2, t2 = jnp.ones((hidden_dim,), jnp.float32), jnp.zeros((hidden_dim,), jnp.float32)
    g3, t3 = jnp.ones((output_dim,), jnp.float32), jnp.zeros((output_dim,), jnp.float32)
    return (w1, b1, g1, t1, w2, b2, g2, t2, w3, b3, g3, t3)


def _reference(x, params):
    """Pure-JAX reference mirroring the PyTorch forward (exact erf GELU)."""
    (w1, b1, g1, t1, w2, b2, g2, t2, w3, b3, g3, t3) = params

    def ln(h, g, b):
        m = jnp.mean(h, axis=-1, keepdims=True)
        v = jnp.mean((h - m) ** 2, axis=-1, keepdims=True)
        return (h - m) / jnp.sqrt(v + _LN_EPS) * g + b

    dot = functools.partial(jnp.dot, precision=jax.lax.Precision.HIGHEST)
    h = dot(x, w1) + b1
    h = jax.nn.gelu(h, approximate=False)
    h = ln(h, g1, t1)
    h = dot(h, w2) + b2
    h = jax.nn.gelu(h, approximate=False)
    h = ln(h, g2, t2)
    h = dot(h, w3) + b3
    return ln(h, g3, t3)


if __name__ == "__main__":
    # Small shapes consistent with the module structure (scaled-down dims).
    B, S = 2, 40
    in_dim, hid_dim, out_dim = 32, 64, 32

    key = jax.random.PRNGKey(0)
    k_x, k_p = jax.random.split(key)
    params = init_params(k_p, in_dim, hid_dim, out_dim)
    x = jax.random.normal(k_x, (B, S, in_dim), dtype=jnp.float32)

    # block_rows=16 so the (padded) 80 rows exercise a multi-step parallel grid.
    out = audio_projection(x, params, block_rows=16)
    out = jax.block_until_ready(out)

    ref = _reference(x, params)
    assert out.shape == (B, S, out_dim) and out.dtype == x.dtype
    max_err = float(jnp.max(jnp.abs(out - ref)))
    assert max_err < 2e-3, f"max abs err {max_err}"

    print("KERNEL_OK")
</pallas_src>

<mosaic_0001>
module attributes {stable_mosaic.version = 11 : i64} {
  func.func @_audio_proj_kernel(%arg0: i32, %arg1: memref<16x32xf32, #tpu.memory_space<vmem>>, %arg2: memref<32x64xf32, #tpu.memory_space<vmem>>, %arg3: memref<1x64xf32, #tpu.memory_space<vmem>>, %arg4: memref<1x64xf32, #tpu.memory_space<vmem>>, %arg5: memref<1x64xf32, #tpu.memory_space<vmem>>, %arg6: memref<64x64xf32, #tpu.memory_space<vmem>>, %arg7: memref<1x64xf32, #tpu.memory_space<vmem>>, %arg8: memref<1x64xf32, #tpu.memory_space<vmem>>, %arg9: memref<1x64xf32, #tpu.memory_space<vmem>>, %arg10: memref<64x32xf32, #tpu.memory_space<vmem>>, %arg11: memref<1x32xf32, #tpu.memory_space<vmem>>, %arg12: memref<1x32xf32, #tpu.memory_space<vmem>>, %arg13: memref<1x32xf32, #tpu.memory_space<vmem>>, %arg14: memref<16x32xf32, #tpu.memory_space<vmem>>) attributes {dimension_semantics = [#tpu.dimension_semantics<parallel>], iteration_bounds = array<i64: 5>, scalar_prefetch = 0 : i64, scratch_operands = 0 : i64, tpu.core_type = #tpu.core_type<tc>, window_params = [{transform_indices = @transform_0, window_bounds = array<i64: 16, 32>}, {pipeline_mode = #tpu.pipeline_mode<synchronous>, transform_indices = @transform_1, window_bounds = array<i64: 32, 64>}, {pipeline_mode = #tpu.pipeline_mode<synchronous>, transform_indices = @transform_2, window_bounds = array<i64: 1, 64>}, {pipeline_mode = #tpu.pipeline_mode<synchronous>, transform_indices = @transform_3, window_bounds = array<i64: 1, 64>}, {pipeline_mode = #tpu.pipeline_mode<synchronous>, transform_indices = @transform_4, window_bounds = array<i64: 1, 64>}, {pipeline_mode = #tpu.pipeline_mode<synchronous>, transform_indices = @transform_5, window_bounds = array<i64: 64, 64>}, {pipeline_mode = #tpu.pipeline_mode<synchronous>, transform_indices = @transform_6, window_bounds = array<i64: 1, 64>}, {pipeline_mode = #tpu.pipeline_mode<synchronous>, transform_indices = @transform_7, window_bounds = array<i64: 1, 64>}, {pipeline_mode = #tpu.pipeline_mode<synchronous>, transform_indices = @transform_8, window_bounds = array<i64: 1, 64>}, {pipeline_mode = #tpu.pipeline_mode<synchronous>, transform_indices = @transform_9, window_bounds = array<i64: 64, 32>}, {pipeline_mode = #tpu.pipeline_mode<synchronous>, transform_indices = @transform_10, window_bounds = array<i64: 1, 32>}, {pipeline_mode = #tpu.pipeline_mode<synchronous>, transform_indices = @transform_11, window_bounds = array<i64: 1, 32>}, {pipeline_mode = #tpu.pipeline_mode<synchronous>, transform_indices = @transform_12, window_bounds = array<i64: 1, 32>}, {transform_indices = @transform_13, window_bounds = array<i64: 16, 32>}]} {
    %c0 = arith.constant 0 : index
    %c0_0 = arith.constant 0 : index
    %0 = vector.load %arg1[%c0, %c0_0] : memref<16x32xf32, #tpu.memory_space<vmem>>, vector<16x32xf32>
    %c0_1 = arith.constant 0 : index
    %c0_2 = arith.constant 0 : index
    %1 = vector.load %arg2[%c0_1, %c0_2] : memref<32x64xf32, #tpu.memory_space<vmem>>, vector<32x64xf32>
    %cst = arith.constant dense<0.000000e+00> : vector<16x64xf32>
    %2 = tpu.matmul %0, %1, %cst {dimension_numbers = #tpu.dot_dimension_numbers<[1], [0], [0], [1], [0, 0, 1, 1], [], []>, precision = #tpu.contract_precision<fp32>} : vector<16x32xf32>, vector<32x64xf32>, vector<16x64xf32> -> vector<16x64xf32>
    %c0_3 = arith.constant 0 : index
    %c0_4 = arith.constant 0 : index
    %3 = vector.load %arg3[%c0_3, %c0_4] : memref<1x64xf32, #tpu.memory_space<vmem>>, vector<1x64xf32>
    %4 = vector.broadcast %3 : vector<1x64xf32> to vector<16x64xf32>
    %5 = arith.addf %2, %4 : vector<16x64xf32>
    %cst_5 = arith.constant 5.000000e-01 : f32
    %6 = vector.broadcast %cst_5 : f32 to vector<16x64xf32>
    %7 = arith.mulf %6, %5 : vector<16x64xf32>
    %cst_6 = arith.constant 0.707106769 : f32
    %8 = vector.broadcast %cst_6 : f32 to vector<16x64xf32>
    %9 = arith.mulf %5, %8 : vector<16x64xf32>
    %10 = math.absf %9 : vector<16x64xf32>
    %cst_7 = arith.constant 0.327591091 : f32
    %11 = vector.broadcast %cst_7 : f32 to vector<16x64xf32>
    %12 = arith.mulf %11, %10 : vector<16x64xf32>
    %cst_8 = arith.constant 1.000000e+00 : f32
    %13 = vector.broadcast %cst_8 : f32 to vector<16x64xf32>
    %14 = arith.addf %13, %12 : vector<16x64xf32>
    %cst_9 = arith.constant 1.000000e+00 : f32
    %15 = vector.broadcast %cst_9 : f32 to vector<16x64xf32>
    %16 = arith.divf %15, %14 : vector<16x64xf32>
    %cst_10 = arith.constant 1.06140542 : f32
    %17 = vector.broadcast %cst_10 : f32 to vector<16x64xf32>
    %18 = arith.mulf %17, %16 : vector<16x64xf32>
    %cst_11 = arith.constant -1.45315206 : f32
    %19 = vector.broadcast %cst_11 : f32 to vector<16x64xf32>
    %20 = arith.addf %18, %19 : vector<16x64xf32>
    %21 = arith.mulf %20, %16 : vector<16x64xf32>
    %cst_12 = arith.constant 1.42141378 : f32
    %22 = vector.broadcast %cst_12 : f32 to vector<16x64xf32>
    %23 = arith.addf %21, %22 : vector<16x64xf32>
    %24 = arith.mulf %23, %16 : vector<16x64xf32>
    %cst_13 = arith.constant -0.284496725 : f32
    %25 = vector.broadcast %cst_13 : f32 to vector<16x64xf32>
    %26 = arith.addf %24, %25 : vector<16x64xf32>
    %27 = arith.mulf %26, %16 : vector<16x64xf32>
    %cst_14 = arith.constant 0.254829586 : f32
    %28 = vector.broadcast %cst_14 : f32 to vector<16x64xf32>
    %29 = arith.addf %27, %28 : vector<16x64xf32>
    %30 = arith.mulf %29, %16 : vector<16x64xf32>
    %cst_15 = arith.constant 0.000000e+00 : f32
    %31 = vector.broadcast %cst_15 : f32 to vector<16x64xf32>
    %32 = arith.subf %31, %10 : vector<16x64xf32>
    %33 = arith.mulf %32, %10 : vector<16x64xf32>
    %34 = math.exp %33 : vector<16x64xf32>
    %35 = arith.mulf %30, %34 : vector<16x64xf32>
    %cst_16 = arith.constant 1.000000e+00 : f32
    %36 = vector.broadcast %cst_16 : f32 to vector<16x64xf32>
    %37 = arith.subf %36, %35 : vector<16x64xf32>
    %cst_17 = arith.constant 0.000000e+00 : f32
    %38 = vector.broadcast %cst_17 : f32 to vector<16x64xf32>
    %39 = arith.cmpf olt, %9, %38 : vector<16x64xf32>
    %cst_18 = arith.constant 0.000000e+00 : f32
    %40 = vector.broadcast %cst_18 : f32 to vector<16x64xf32>
    %41 = arith.subf %40, %37 : vector<16x64xf32>
    %42 = arith.select %39, %41, %37 : vector<16x64xi1>, vector<16x64xf32>
    %cst_19 = arith.constant 1.000000e+00 : f32
    %43 = vector.broadcast %cst_19 : f32 to vector<16x64xf32>
    %44 = arith.addf %43, %42 : vector<16x64xf32>
    %45 = arith.mulf %7, %44 : vector<16x64xf32>
    %c0_20 = arith.constant 0 : index
    %c0_21 = arith.constant 0 : index
    %46 = vector.load %arg4[%c0_20, %c0_21] : memref<1x64xf32, #tpu.memory_space<vmem>>, vector<1x64xf32>
    %c0_22 = arith.constant 0 : index
    %c0_23 = arith.constant 0 : index
    %47 = vector.load %arg5[%c0_22, %c0_23] : memref<1x64xf32, #tpu.memory_space<vmem>>, vector<1x64xf32>
    %cst_24 = arith.constant dense<0.000000e+00> : vector<16xf32>
    %48 = vector.multi_reduction <add>, %45, %cst_24 [1] : vector<16x64xf32> to vector<16xf32>
    %49 = vector.shape_cast %48 : vector<16xf32> to vector<16x1xf32>
    %cst_25 = arith.constant 6.400000e+01 : f32
    %50 = vector.broadcast %cst_25 : f32 to vector<16x1xf32>
    %51 = arith.divf %49, %50 : vector<16x1xf32>
    %52 = vector.broadcast %51 : vector<16x1xf32> to vector<16x64xf32>
    %53 = arith.subf %45, %52 : vector<16x64xf32>
    %54 = arith.mulf %53, %53 : vector<16x64xf32>
    %cst_26 = arith.constant dense<0.000000e+00> : vector<16xf32>
    %55 = vector.multi_reduction <add>, %54, %cst_26 [1] : vector<16x64xf32> to vector<16xf32>
    %56 = vector.shape_cast %55 : vector<16xf32> to vector<16x1xf32>
    %cst_27 = arith.constant 6.400000e+01 : f32
    %57 = vector.broadcast %cst_27 : f32 to vector<16x1xf32>
    %58 = arith.divf %56, %57 : vector<16x1xf32>
    %cst_28 = arith.constant 9.99999974E-6 : f32
    %59 = vector.broadcast %cst_28 : f32 to vector<16x1xf32>
    %60 = arith.addf %58, %59 : vector<16x1xf32>
    %61 = math.rsqrt %60 : vector<16x1xf32>
    %62 = vector.broadcast %61 : vector<16x1xf32> to vector<16x64xf32>
    %63 = arith.mulf %53, %62 : vector<16x64xf32>
    %64 = vector.broadcast %46 : vector<1x64xf32> to vector<16x64xf32>
    %65 = arith.mulf %63, %64 : vector<16x64xf32>
    %66 = vector.broadcast %47 : vector<1x64xf32> to vector<16x64xf32>
    %67 = arith.addf %65, %66 : vector<16x64xf32>
    %c0_29 = arith.constant 0 : index
    %c0_30 = arith.constant 0 : index
    %68 = vector.load %arg6[%c0_29, %c0_30] : memref<64x64xf32, #tpu.memory_space<vmem>>, vector<64x64xf32>
    %cst_31 = arith.constant dense<0.000000e+00> : vector<16x64xf32>
    %69 = tpu.matmul %67, %68, %cst_31 {dimension_numbers = #tpu.dot_dimension_numbers<[1], [0], [0], [1], [0, 0, 1, 1], [], []>, precision = #tpu.contract_precision<fp32>} : vector<16x64xf32>, vector<64x64xf32>, vector<16x64xf32> -> vector<16x64xf32>
    %c0_32 = arith.constant 0 : index
    %c0_33 = arith.constant 0 : index
    %70 = vector.load %arg7[%c0_32, %c0_33] : memref<1x64xf32, #tpu.memory_space<vmem>>, vector<1x64xf32>
    %71 = vector.broadcast %70 : vector<1x64xf32> to vector<16x64xf32>
    %72 = arith.addf %69, %71 : vector<16x64xf32>
    %cst_34 = arith.constant 5.000000e-01 : f32
    %73 = vector.broadcast %cst_34 : f32 to vector<16x64xf32>
    %74 = arith.mulf %73, %72 : vector<16x64xf32>
    %cst_35 = arith.constant 0.707106769 : f32
    %75 = vector.broadcast %cst_35 : f32 to vector<16x64xf32>
    %76 = arith.mulf %72, %75 : vector<16x64xf32>
    %77 = math.absf %76 : vector<16x64xf32>
    %cst_36 = arith.constant 0.327591091 : f32
    %78 = vector.broadcast %cst_36 : f32 to vector<16x64xf32>
    %79 = arith.mulf %78, %77 : vector<16x64xf32>
    %cst_37 = arith.constant 1.000000e+00 : f32
    %80 = vector.broadcast %cst_37 : f32 to vector<16x64xf32>
    %81 = arith.addf %80, %79 : vector<16x64xf32>
    %cst_38 = arith.constant 1.000000e+00 : f32
    %82 = vector.broadcast %cst_38 : f32 to vector<16x64xf32>
    %83 = arith.divf %82, %81 : vector<16x64xf32>
    %cst_39 = arith.constant 1.06140542 : f32
    %84 = vector.broadcast %cst_39 : f32 to vector<16x64xf32>
    %85 = arith.mulf %84, %83 : vector<16x64xf32>
    %cst_40 = arith.constant -1.45315206 : f32
    %86 = vector.broadcast %cst_40 : f32 to vector<16x64xf32>
    %87 = arith.addf %85, %86 : vector<16x64xf32>
    %88 = arith.mulf %87, %83 : vector<16x64xf32>
    %cst_41 = arith.constant 1.42141378 : f32
    %89 = vector.broadcast %cst_41 : f32 to vector<16x64xf32>
    %90 = arith.addf %88, %89 : vector<16x64xf32>
    %91 = arith.mulf %90, %83 : vector<16x64xf32>
    %cst_42 = arith.constant -0.284496725 : f32
    %92 = vector.broadcast %cst_42 : f32 to vector<16x64xf32>
    %93 = arith.addf %91, %92 : vector<16x64xf32>
    %94 = arith.mulf %93, %83 : vector<16x64xf32>
    %cst_43 = arith.constant 0.254829586 : f32
    %95 = vector.broadcast %cst_43 : f32 to vector<16x64xf32>
    %96 = arith.addf %94, %95 : vector<16x64xf32>
    %97 = arith.mulf %96, %83 : vector<16x64xf32>
    %cst_44 = arith.constant 0.000000e+00 : f32
    %98 = vector.broadcast %cst_44 : f32 to vector<16x64xf32>
    %99 = arith.subf %98, %77 : vector<16x64xf32>
    %100 = arith.mulf %99, %77 : vector<16x64xf32>
    %101 = math.exp %100 : vector<16x64xf32>
    %102 = arith.mulf %97, %101 : vector<16x64xf32>
    %cst_45 = arith.constant 1.000000e+00 : f32
    %103 = vector.broadcast %cst_45 : f32 to vector<16x64xf32>
    %104 = arith.subf %103, %102 : vector<16x64xf32>
    %cst_46 = arith.constant 0.000000e+00 : f32
    %105 = vector.broadcast %cst_46 : f32 to vector<16x64xf32>
    %106 = arith.cmpf olt, %76, %105 : vector<16x64xf32>
    %cst_47 = arith.constant 0.000000e+00 : f32
    %107 = vector.broadcast %cst_47 : f32 to vector<16x64xf32>
    %108 = arith.subf %107, %104 : vector<16x64xf32>
    %109 = arith.select %106, %108, %104 : vector<16x64xi1>, vector<16x64xf32>
    %cst_48 = arith.constant 1.000000e+00 : f32
    %110 = vector.broadcast %cst_48 : f32 to vector<16x64xf32>
    %111 = arith.addf %110, %109 : vector<16x64xf32>
    %112 = arith.mulf %74, %111 : vector<16x64xf32>
    %c0_49 = arith.constant 0 : index
    %c0_50 = arith.constant 0 : index
    %113 = vector.load %arg8[%c0_49, %c0_50] : memref<1x64xf32, #tpu.memory_space<vmem>>, vector<1x64xf32>
    %c0_51 = arith.constant 0 : index
    %c0_52 = arith.constant 0 : index
    %114 = vector.load %arg9[%c0_51, %c0_52] : memref<1x64xf32, #tpu.memory_space<vmem>>, vector<1x64xf32>
    %cst_53 = arith.constant dense<0.000000e+00> : vector<16xf32>
    %115 = vector.multi_reduction <add>, %112, %cst_53 [1] : vector<16x64xf32> to vector<16xf32>
    %116 = vector.shape_cast %115 : vector<16xf32> to vector<16x1xf32>
    %cst_54 = arith.constant 6.400000e+01 : f32
    %117 = vector.broadcast %cst_54 : f32 to vector<16x1xf32>
    %118 = arith.divf %116, %117 : vector<16x1xf32>
    %119 = vector.broadcast %118 : vector<16x1xf32> to vector<16x64xf32>
    %120 = arith.subf %112, %119 : vector<16x64xf32>
    %121 = arith.mulf %120, %120 : vector<16x64xf32>
    %cst_55 = arith.constant dense<0.000000e+00> : vector<16xf32>
    %122 = vector.multi_reduction <add>, %121, %cst_55 [1] : vector<16x64xf32> to vector<16xf32>
    %123 = vector.shape_cast %122 : vector<16xf32> to vector<16x1xf32>
    %cst_56 = arith.constant 6.400000e+01 : f32
    %124 = vector.broadcast %cst_56 : f32 to vector<16x1xf32>
    %125 = arith.divf %123, %124 : vector<16x1xf32>
    %cst_57 = arith.constant 9.99999974E-6 : f32
    %126 = vector.broadcast %cst_57 : f32 to vector<16x1xf32>
    %127 = arith.addf %125, %126 : vector<16x1xf32>
    %128 = math.rsqrt %127 : vector<16x1xf32>
    %129 = vector.broadcast %128 : vector<16x1xf32> to vector<16x64xf32>
    %130 = arith.mulf %120, %129 : vector<16x64xf32>
    %131 = vector.broadcast %113 : vector<1x64xf32> to vector<16x64xf32>
    %132 = arith.mulf %130, %131 : vector<16x64xf32>
    %133 = vector.broadcast %114 : vector<1x64xf32> to vector<16x64xf32>
    %134 = arith.addf %132, %133 : vector<16x64xf32>
    %c0_58 = arith.constant 0 : index
    %c0_59 = arith.constant 0 : index
    %135 = vector.load %arg10[%c0_58, %c0_59] : memref<64x32xf32, #tpu.memory_space<vmem>>, vector<64x32xf32>
    %cst_60 = arith.constant dense<0.000000e+00> : vector<16x32xf32>
    %136 = tpu.matmul %134, %135, %cst_60 {dimension_numbers = #tpu.dot_dimension_numbers<[1], [0], [0], [1], [0, 0, 1, 1], [], []>, precision = #tpu.contract_precision<fp32>} : vector<16x64xf32>, vector<64x32xf32>, vector<16x32xf32> -> vector<16x32xf32>
    %c0_61 = arith.constant 0 : index
    %c0_62 = arith.constant 0 : index
    %137 = vector.load %arg11[%c0_61, %c0_62] : memref<1x32xf32, #tpu.memory_space<vmem>>, vector<1x32xf32>
    %138 = vector.broadcast %137 : vector<1x32xf32> to vector<16x32xf32>
    %139 = arith.addf %136, %138 : vector<16x32xf32>
    %c0_63 = arith.constant 0 : index
    %c0_64 = arith.constant 0 : index
    %140 = vector.load %arg12[%c0_63, %c0_64] : memref<1x32xf32, #tpu.memory_space<vmem>>, vector<1x32xf32>
    %c0_65 = arith.constant 0 : index
    %c0_66 = arith.constant 0 : index
    %141 = vector.load %arg13[%c0_65, %c0_66] : memref<1x32xf32, #tpu.memory_space<vmem>>, vector<1x32xf32>
    %cst_67 = arith.constant dense<0.000000e+00> : vector<16xf32>
    %142 = vector.multi_reduction <add>, %139, %cst_67 [1] : vector<16x32xf32> to vector<16xf32>
    %143 = vector.shape_cast %142 : vector<16xf32> to vector<16x1xf32>
    %cst_68 = arith.constant 3.200000e+01 : f32
    %144 = vector.broadcast %cst_68 : f32 to vector<16x1xf32>
    %145 = arith.divf %143, %144 : vector<16x1xf32>
    %146 = vector.broadcast %145 : vector<16x1xf32> to vector<16x32xf32>
    %147 = arith.subf %139, %146 : vector<16x32xf32>
    %148 = arith.mulf %147, %147 : vector<16x32xf32>
    %cst_69 = arith.constant dense<0.000000e+00> : vector<16xf32>
    %149 = vector.multi_reduction <add>, %148, %cst_69 [1] : vector<16x32xf32> to vector<16xf32>
    %150 = vector.shape_cast %149 : vector<16xf32> to vector<16x1xf32>
    %cst_70 = arith.constant 3.200000e+01 : f32
    %151 = vector.broadcast %cst_70 : f32 to vector<16x1xf32>
    %152 = arith.divf %150, %151 : vector<16x1xf32>
    %cst_71 = arith.constant 9.99999974E-6 : f32
    %153 = vector.broadcast %cst_71 : f32 to vector<16x1xf32>
    %154 = arith.addf %152, %153 : vector<16x1xf32>
    %155 = math.rsqrt %154 : vector<16x1xf32>
    %156 = vector.broadcast %155 : vector<16x1xf32> to vector<16x32xf32>
    %157 = arith.mulf %147, %156 : vector<16x32xf32>
    %158 = vector.broadcast %140 : vector<1x32xf32> to vector<16x32xf32>
    %159 = arith.mulf %157, %158 : vector<16x32xf32>
    %160 = vector.broadcast %141 : vector<1x32xf32> to vector<16x32xf32>
    %161 = arith.addf %159, %160 : vector<16x32xf32>
    %c0_72 = arith.constant 0 : index
    %c0_73 = arith.constant 0 : index
    %162 = vector.load %arg14[%c0_72, %c0_73] : memref<16x32xf32, #tpu.memory_space<vmem>>, vector<16x32xf32>
    tpu.vector_store %arg14[%c0_72, %c0_73], %161 {strides = array<i32>} : memref<16x32xf32, #tpu.memory_space<vmem>>, vector<16x32xf32>,
    return
  }
  func.func @transform_0(%arg0: i32) -> (i32, i32) {
    %c0_i32 = arith.constant 0 : i32
    %c0_i32_0 = arith.constant 0 : i32
    return %arg0, %c0_i32 : i32, i32
  }
  func.func @transform_1(%arg0: i32) -> (i32, i32) {
    %c0_i32 = arith.constant 0 : i32
    %c0_i32_0 = arith.constant 0 : i32
    %c0_i32_1 = arith.constant 0 : i32
    return %c0_i32, %c0_i32_0 : i32, i32
  }
  func.func @transform_2(%arg0: i32) -> (i32, i32) {
    %c0_i32 = arith.constant 0 : i32
    %c0_i32_0 = arith.constant 0 : i32
    %c0_i32_1 = arith.constant 0 : i32
    return %c0_i32, %c0_i32_0 : i32, i32
  }
  func.func @transform_3(%arg0: i32) -> (i32, i32) {
    %c0_i32 = arith.constant 0 : i32
    %c0_i32_0 = arith.constant 0 : i32
    %c0_i32_1 = arith.constant 0 : i32
    return %c0_i32, %c0_i32_0 : i32, i32
  }
  func.func @transform_4(%arg0: i32) -> (i32, i32) {
    %c0_i32 = arith.constant 0 : i32
    %c0_i32_0 = arith.constant 0 : i32
    %c0_i32_1 = arith.constant 0 : i32
    return %c0_i32, %c0_i32_0 : i32, i32
  }
  func.func @transform_5(%arg0: i32) -> (i32, i32) {
    %c0_i32 = arith.constant 0 : i32
    %c0_i32_0 = arith.constant 0 : i32
    %c0_i32_1 = arith.constant 0 : i32
    return %c0_i32, %c0_i32_0 : i32, i32
  }
  func.func @transform_6(%arg0: i32) -> (i32, i32) {
    %c0_i32 = arith.constant 0 : i32
    %c0_i32_0 = arith.constant 0 : i32
    %c0_i32_1 = arith.constant 0 : i32
    return %c0_i32, %c0_i32_0 : i32, i32
  }
  func.func @transform_7(%arg0: i32) -> (i32, i32) {
    %c0_i32 = arith.constant 0 : i32
    %c0_i32_0 = arith.constant 0 : i32
    %c0_i32_1 = arith.constant 0 : i32
    return %c0_i32, %c0_i32_0 : i32, i32
  }
  func.func @transform_8(%arg0: i32) -> (i32, i32) {
    %c0_i32 = arith.constant 0 : i32
    %c0_i32_0 = arith.constant 0 : i32
    %c0_i32_1 = arith.constant 0 : i32
    return %c0_i32, %c0_i32_0 : i32, i32
  }
  func.func @transform_9(%arg0: i32) -> (i32, i32) {
    %c0_i32 = arith.constant 0 : i32
    %c0_i32_0 = arith.constant 0 : i32
    %c0_i32_1 = arith.constant 0 : i32
    return %c0_i32, %c0_i32_0 : i32, i32
  }
  func.func @transform_10(%arg0: i32) -> (i32, i32) {
    %c0_i32 = arith.constant 0 : i32
    %c0_i32_0 = arith.constant 0 : i32
    %c0_i32_1 = arith.constant 0 : i32
    return %c0_i32, %c0_i32_0 : i32, i32
  }
  func.func @transform_11(%arg0: i32) -> (i32, i32) {
    %c0_i32 = arith.constant 0 : i32
    %c0_i32_0 = arith.constant 0 : i32
    %c0_i32_1 = arith.constant 0 : i32
    return %c0_i32, %c0_i32_0 : i32, i32
  }
  func.func @transform_12(%arg0: i32) -> (i32, i32) {
    %c0_i32 = arith.constant 0 : i32
    %c0_i32_0 = arith.constant 0 : i32
    %c0_i32_1 = arith.constant 0 : i32
    return %c0_i32, %c0_i32_0 : i32, i32
  }
  func.func @transform_13(%arg0: i32) -> (i32, i32) {
    %c0_i32 = arith.constant 0 : i32
    %c0_i32_0 = arith.constant 0 : i32
    return %arg0, %c0_i32 : i32, i32
  }
}

</mosaic_0001>

<llo_original>
// kernel: tpu_custom_call.1
$region0: #{tpu_custom_call.1}
  #allocation0 [shape = 'u32[]', space=smem, size = 0x4, offset = 0x4, fixed_abs, tag = 'smem constant byte address 0x4 - core index']
  #allocation1 [shape = 'u32[144,128]{1,0:T(1,128)}', space=vmem, size = 0x12000, scoped, tag = 'internal scratch']
  %s0 = inlined_call_operand.vmem [shape: f32[80,32], index: 0, kind: input, shape index: {}]
  %s1 = inlined_call_operand.vmem [shape: f32[32,64], index: 1, kind: input, shape index: {}]
  %s2 = inlined_call_operand.vmem [shape: f32[1,64], index: 2, kind: input, shape index: {}]
  %s3 = inlined_call_operand.vmem [shape: f32[1,64], index: 3, kind: input, shape index: {}]
  %s4 = inlined_call_operand.vmem [shape: f32[1,64], index: 4, kind: input, shape index: {}]
  %s5 = inlined_call_operand.vmem [shape: f32[64,64], index: 5, kind: input, shape index: {}]
  %s6 = inlined_call_operand.vmem [shape: f32[1,64], index: 6, kind: input, shape index: {}]
  %s7 = inlined_call_operand.vmem [shape: f32[1,64], index: 7, kind: input, shape index: {}]
  %s8 = inlined_call_operand.vmem [shape: f32[1,64], index: 8, kind: input, shape index: {}]
  %s9 = inlined_call_operand.vmem [shape: f32[64,32], index: 9, kind: input, shape index: {}]
  %s10 = inlined_call_operand.vmem [shape: f32[1,32], index: 10, kind: input, shape index: {}]
  %s11 = inlined_call_operand.vmem [shape: f32[1,32], index: 11, kind: input, shape index: {}]
  %s12 = inlined_call_operand.vmem [shape: f32[1,32], index: 12, kind: input, shape index: {}]
  %s13 = inlined_call_operand.vmem [shape: f32[80,32], index: 13, kind: output, shape index: {}]
  %s14 = sld [smem:[#allocation0]]
  $region85: #{tpu_custom_call.1} parent=0
    _
  %s16 = ssub.s32 1, %s14
  %s17 = scalar_select 0, %s16, %s14
  loop: start=0, step=1, limit=7
  $region2: #{tpu_custom_call.1} parent=0 // loop_pre_header
    _
  $region3: #{tpu_custom_call.1} parent=0 // loop_header
    %s19 = sphi 0, %s23
    %p20 = scmp.ge.s32.totalorder %s19, 7
    %s29 = sphi 0, %s31
    %s32 = sphi 0, %s29
    %s33 = sphi 0, %s32
    %s49 = sphi 0, %s33
    %s53 = sphi 0, %s53
    %s55 = sphi 0, %s53
    %s56 = sphi 0, %s55
    %s70 = sphi 0, %s56
    %s74 = sphi 0, %s74
    %s76 = sphi 0, %s74
    %s77 = sphi 0, %s76
    %s91 = sphi 0, %s77
    %s95 = sphi 0, %s95
    %s97 = sphi 0, %s95
    %s98 = sphi 0, %s97
    %s112 = sphi 0, %s98
    %s116 = sphi 0, %s116
    %s118 = sphi 0, %s116
    %s119 = sphi 0, %s118
    %s133 = sphi 0, %s119
    %s137 = sphi 0, %s137
    %s139 = sphi 0, %s137
    %s140 = sphi 0, %s139
    %s154 = sphi 0, %s140
    %s158 = sphi 0, %s158
    %s160 = sphi 0, %s158
    %s161 = sphi 0, %s160
    %s175 = sphi 0, %s161
    %s179 = sphi 0, %s179
    %s181 = sphi 0, %s179
    %s182 = sphi 0, %s181
    %s196 = sphi 0, %s182
    %s200 = sphi 0, %s200
    %s202 = sphi 0, %s200
    %s203 = sphi 0, %s202
    %s217 = sphi 0, %s203
    %s221 = sphi 0, %s221
    %s223 = sphi 0, %s221
    %s224 = sphi 0, %s223
    %s238 = sphi 0, %s224
    %s242 = sphi 0, %s242
    %s244 = sphi 0, %s242
    %s245 = sphi 0, %s244
    %s259 = sphi 0, %s245
    %s263 = sphi 0, %s263
    %s265 = sphi 0, %s263
    %s266 = sphi 0, %s265
    %s280 = sphi 0, %s266
    %s284 = sphi 0, %s284
    %s286 = sphi 0, %s284
    %s287 = sphi 0, %s286
    %s301 = sphi 0, %s287
    %s307 = sphi 0, %s309
    %s310 = sphi 0, %s307
    %s311 = sphi 0, %s310
    %s327 = sphi 0, %s311
  $region4: #{tpu_custom_call.1} parent=0 // loop_header_branch
    %22 = sbr.rel (%p20) target = $region8
  $region5: #{tpu_custom_call.1} parent=0 // loop_body
    %s24 = ssub.s32 %s19, 1
    %s25 = ssub.s32 %s19, 2
    %s26 = sadd.s32 %s19, 1
    %s27 = ssub.s32 %s19, %s26
    %p28 = scmp.eq.s32.totalorder %s27, 0
    %s30 = sadd.s32 %s29, 1
    %s31 = scalar_select %p28, %s29, %s30
    %p34 = pneg %p28
    %p35 = scmp.eq.s32.totalorder %s19, 4
    %p36 = por %p34, %p35
    %p37 = scmp.ne.s32.totalorder %s29, %s32
    %p38 = scmp.eq.s32.totalorder %s19, 0
    %p39 = por %p37, %p38
    %p40 = scmp.ne.s32.totalorder %s29, %s32
    %p41 = scmp.eq.s32.totalorder %s24, 4
    %p42 = por %p40, %p41
    %p43 = scmp.ne.s32.totalorder %s32, %s33
    %p44 = scmp.eq.s32.totalorder %s24, 0
    %p45 = por %p43, %p44
    %p46 = scmp.ne.s32.totalorder %s32, %s33
    %p47 = scmp.eq.s32.totalorder %s25, 4
    %p48 = por %p46, %p47
    %p50 = scmp.ne.s32.totalorder %s33, %s49
    %p51 = scmp.eq.s32.totalorder %s25, 0
    %p52 = por %p50, %p51
    %s54 = sadd.s32 %s53, 1
    %p57 = scmp.eq.s32.totalorder %s19, 4
    %p58 = scmp.ne.s32.totalorder %s53, %s55
    %p59 = scmp.eq.s32.totalorder %s19, 0
    %p60 = por %p58, %p59
    %p61 = scmp.ne.s32.totalorder %s53, %s55
    %p62 = scmp.eq.s32.totalorder %s24, 4
    %p63 = por %p61, %p62
    %p64 = scmp.ne.s32.totalorder %s55, %s56
    %p65 = scmp.eq.s32.totalorder %s24, 0
    %p66 = por %p64, %p65
    %p67 = scmp.ne.s32.totalorder %s55, %s56
    %p68 = scmp.eq.s32.totalorder %s25, 4
    %p69 = por %p67, %p68
    %p71 = scmp.ne.s32.totalorder %s56, %s70
    %p72 = scmp.eq.s32.totalorder %s25, 0
    %p73 = por %p71, %p72
    %s75 = sadd.s32 %s74, 1
    %p78 = scmp.eq.s32.totalorder %s19, 4
    %p79 = scmp.ne.s32.totalorder %s74, %s76
    %p80 = scmp.eq.s32.totalorder %s19, 0
    %p81 = por %p79, %p80
    %p82 = scmp.ne.s32.totalorder %s74, %s76
    %p83 = scmp.eq.s32.totalorder %s24, 4
    %p84 = por %p82, %p83
    %p85 = scmp.ne.s32.totalorder %s76, %s77
    %p86 = scmp.eq.s32.totalorder %s24, 0
    %p87 = por %p85, %p86
    %p88 = scmp.ne.s32.totalorder %s76, %s77
    %p89 = scmp.eq.s32.totalorder %s25, 4
    %p90 = por %p88, %p89
    %p92 = scmp.ne.s32.totalorder %s77, %s91
    %p93 = scmp.eq.s32.totalorder %s25, 0
    %p94 = por %p92, %p93
    %s96 = sadd.s32 %s95, 1
    %p99 = scmp.eq.s32.totalorder %s19, 4
    %p100 = scmp.ne.s32.totalorder %s95, %s97
    %p101 = scmp.eq.s32.totalorder %s19, 0
    %p102 = por %p100, %p101
    %p103 = scmp.ne.s32.totalorder %s95, %s97
    %p104 = scmp.eq.s32.totalorder %s24, 4
    %p105 = por %p103, %p104
    %p106 = scmp.ne.s32.totalorder %s97, %s98
    %p107 = scmp.eq.s32.totalorder %s24, 0
    %p108 = por %p106, %p107
    %p109 = scmp.ne.s32.totalorder %s97, %s98
    %p110 = scmp.eq.s32.totalorder %s25, 4
    %p111 = por %p109, %p110
    %p113 = scmp.ne.s32.totalorder %s98, %s112
    %p114 = scmp.eq.s32.totalorder %s25, 0
    %p115 = por %p113, %p114
    %s117 = sadd.s32 %s116, 1
    %p120 = scmp.eq.s32.totalorder %s19, 4
    %p121 = scmp.ne.s32.totalorder %s116, %s118
    %p122 = scmp.eq.s32.totalorder %s19, 0
    %p123 = por %p121, %p122
    %p124 = scmp.ne.s32.totalorder %s116, %s118
    %p125 = scmp.eq.s32.totalorder %s24, 4
    %p126 = por %p124, %p125
    %p127 = scmp.ne.s32.totalorder %s118, %s119
    %p128 = scmp.eq.s32.totalorder %s24, 0
    %p129 = por %p127, %p128
    %p130 = scmp.ne.s32.totalorder %s118, %s119
    %p131 = scmp.eq.s32.totalorder %s25, 4
    %p132 = por %p130, %p131
    %p134 = scmp.ne.s32.totalorder %s119, %s133
    %p135 = scmp.eq.s32.totalorder %s25, 0
    %p136 = por %p134, %p135
    %s138 = sadd.s32 %s137, 1
    %p141 = scmp.eq.s32.totalorder %s19, 4
    %p142 = scmp.ne.s32.totalorder %s137, %s139
    %p143 = scmp.eq.s32.totalorder %s19, 0
    %p144 = por %p142, %p143
    %p145 = scmp.ne.s32.totalorder %s137, %s139
    %p146 = scmp.eq.s32.totalorder %s24, 4
    %p147 = por %p145, %p146
    %p148 = scmp.ne.s32.totalorder %s139, %s140
    %p149 = scmp.eq.s32.totalorder %s24, 0
    %p150 = por %p148, %p149
    %p151 = scmp.ne.s32.totalorder %s139, %s140
    %p152 = scmp.eq.s32.totalorder %s25, 4
    %p153 = por %p151, %p152
    %p155 = scmp.ne.s32.totalorder %s140, %s154
    %p156 = scmp.eq.s32.totalorder %s25, 0
    %p157 = por %p155, %p156
    %s159 = sadd.s32 %s158, 1
    %p162 = scmp.eq.s32.totalorder %s19, 4
    %p163 = scmp.ne.s32.totalorder %s158, %s160
    %p164 = scmp.eq.s32.totalorder %s19, 0
    %p165 = por %p163, %p164
    %p166 = scmp.ne.s32.totalorder %s158, %s160
    %p167 = scmp.eq.s32.totalorder %s24, 4
    %p168 = por %p166, %p167
    %p169 = scmp.ne.s32.totalorder %s160, %s161
    %p170 = scmp.eq.s32.totalorder %s24, 0
    %p171 = por %p169, %p170
    %p172 = scmp.ne.s32.totalorder %s160, %s161
    %p173 = scmp.eq.s32.totalorder %s25, 4
    %p174 = por %p172, %p173
    %p176 = scmp.ne.s32.totalorder %s161, %s175
    %p177 = scmp.eq.s32.totalorder %s25, 0
    %p178 = por %p176, %p177
    %s180 = sadd.s32 %s179, 1
    %p183 = scmp.eq.s32.totalorder %s19, 4
    %p184 = scmp.ne.s32.totalorder %s179, %s181
    %p185 = scmp.eq.s32.totalorder %s19, 0
    %p186 = por %p184, %p185
    %p187 = scmp.ne.s32.totalorder %s179, %s181
    %p188 = scmp.eq.s32.totalorder %s24, 4
    %p189 = por %p187, %p188
    %p190 = scmp.ne.s32.totalorder %s181, %s182
    %p191 = scmp.eq.s32.totalorder %s24, 0
    %p192 = por %p190, %p191
    %p193 = scmp.ne.s32.totalorder %s181, %s182
    %p194 = scmp.eq.s32.totalorder %s25, 4
    %p195 = por %p193, %p194
    %p197 = scmp.ne.s32.totalorder %s182, %s196
    %p198 = scmp.eq.s32.totalorder %s25, 0
    %p199 = por %p197, %p198
    %s201 = sadd.s32 %s200, 1
    %p204 = scmp.eq.s32.totalorder %s19, 4
    %p205 = scmp.ne.s32.totalorder %s200, %s202
    %p206 = scmp.eq.s32.totalorder %s19, 0
    %p207 = por %p205, %p206
    %p208 = scmp.ne.s32.totalorder %s200, %s202
    %p209 = scmp.eq.s32.totalorder %s24, 4
    %p210 = por %p208, %p209
    %p211 = scmp.ne.s32.totalorder %s202, %s203
    %p212 = scmp.eq.s32.totalorder %s24, 0
    %p213 = por %p211, %p212
    %p214 = scmp.ne.s32.totalorder %s202, %s203
    %p215 = scmp.eq.s32.totalorder %s25, 4
    %p216 = por %p214, %p215
    %p218 = scmp.ne.s32.totalorder %s203, %s217
    %p219 = scmp.eq.s32.totalorder %s25, 0
    %p220 = por %p218, %p219
    %s222 = sadd.s32 %s221, 1
    %p225 = scmp.eq.s32.totalorder %s19, 4
    %p226 = scmp.ne.s32.totalorder %s221, %s223
    %p227 = scmp.eq.s32.totalorder %s19, 0
    %p228 = por %p226, %p227
    %p229 = scmp.ne.s32.totalorder %s221, %s223
    %p230 = scmp.eq.s32.totalorder %s24, 4
    %p231 = por %p229, %p230
    %p232 = scmp.ne.s32.totalorder %s223, %s224
    %p233 = scmp.eq.s32.totalorder %s24, 0
    %p234 = por %p232, %p233
    %p235 = scmp.ne.s32.totalorder %s223, %s224
    %p236 = scmp.eq.s32.totalorder %s25, 4
    %p237 = por %p235, %p236
    %p239 = scmp.ne.s32.totalorder %s224, %s238
    %p240 = scmp.eq.s32.totalorder %s25, 0
    %p241 = por %p239, %p240
    %s243 = sadd.s32 %s242, 1
    %p246 = scmp.eq.s32.totalorder %s19, 4
    %p247 = scmp.ne.s32.totalorder %s242, %s244
    %p248 = scmp.eq.s32.totalorder %s19, 0
    %p249 = por %p247, %p248
    %p250 = scmp.ne.s32.totalorder %s242, %s244
    %p251 = scmp.eq.s32.totalorder %s24, 4
    %p252 = por %p250, %p251
    %p253 = scmp.ne.s32.totalorder %s244, %s245
    %p254 = scmp.eq.s32.totalorder %s24, 0
    %p255 = por %p253, %p254
    %p256 = scmp.ne.s32.totalorder %s244, %s245
    %p257 = scmp.eq.s32.totalorder %s25, 4
    %p258 = por %p256, %p257
    %p260 = scmp.ne.s32.totalorder %s245, %s259
    %p261 = scmp.eq.s32.totalorder %s25, 0
    %p262 = por %p260, %p261
    %s264 = sadd.s32 %s263, 1
    %p267 = scmp.eq.s32.totalorder %s19, 4
    %p268 = scmp.ne.s32.totalorder %s263, %s265
    %p269 = scmp.eq.s32.totalorder %s19, 0
    %p270 = por %p268, %p269
    %p271 = scmp.ne.s32.totalorder %s263, %s265
    %p272 = scmp.eq.s32.totalorder %s24, 4
    %p273 = por %p271, %p272
    %p274 = scmp.ne.s32.totalorder %s265, %s266
    %p275 = scmp.eq.s32.totalorder %s24, 0
    %p276 = por %p274, %p275
    %p277 = scmp.ne.s32.totalorder %s265, %s266
    %p278 = scmp.eq.s32.totalorder %s25, 4
    %p279 = por %p277, %p278
    %p281 = scmp.ne.s32.totalorder %s266, %s280
    %p282 = scmp.eq.s32.totalorder %s25, 0
    %p283 = por %p281, %p282
    %s285 = sadd.s32 %s284, 1
    %p288 = scmp.eq.s32.totalorder %s19, 4
    %p289 = scmp.ne.s32.totalorder %s284, %s286
    %p290 = scmp.eq.s32.totalorder %s19, 0
    %p291 = por %p289, %p290
    %p292 = scmp.ne.s32.totalorder %s284, %s286
    %p293 = scmp.eq.s32.totalorder %s24, 4
    %p294 = por %p292, %p293
    %p295 = scmp.ne.s32.totalorder %s286, %s287
    %p296 = scmp.eq.s32.totalorder %s24, 0
    %p297 = por %p295, %p296
    %p298 = scmp.ne.s32.totalorder %s286, %s287
    %p299 = scmp.eq.s32.totalorder %s25, 4
    %p300 = por %p298, %p299
    %p302 = scmp.ne.s32.totalorder %s287, %s301
    %p303 = scmp.eq.s32.totalorder %s25, 0
    %p304 = por %p302, %p303
    %s305 = ssub.s32 %s19, %s26
    %p306 = scmp.eq.s32.totalorder %s305, 0
    %s308 = sadd.s32 %s307, 1
    %s309 = scalar_select %p306, %s307, %s308
    %p312 = pneg %p306
    %p313 = scmp.eq.s32.totalorder %s19, 4
    %p314 = por %p312, %p313
    %p315 = scmp.ne.s32.totalorder %s307, %s310
    %p316 = scmp.eq.s32.totalorder %s19, 0
    %p317 = por %p315, %p316
    %p318 = scmp.ne.s32.totalorder %s307, %s310
    %p319 = scmp.eq.s32.totalorder %s24, 4
    %p320 = por %p318, %p319
    %p321 = scmp.ne.s32.totalorder %s310, %s311
    %p322 = scmp.eq.s32.totalorder %s24, 0
    %p323 = por %p321, %p322
    %p324 = scmp.ne.s32.totalorder %s310, %s311
    %p325 = scmp.eq.s32.totalorder %s25, 4
    %p326 = por %p324, %p325
    %p328 = scmp.ne.s32.totalorder %s311, %s327
    %p329 = scmp.eq.s32.totalorder %s25, 0
    %p330 = por %p328, %p329
    %p331 = scmp.le.s32.totalorder 1, %s19
    %p332 = scmp.lt.s32.totalorder %s19, 6
    %p333 = pnand %p331, %p332
    %p334 = pneg %p333
    // Predicated region
    $region9: #{tpu_custom_call.1} parent=5 // pred_check
      _
    $region10: #{tpu_custom_call.1} parent=5 // pred_check_branch
      %336 = sbr.rel (%p333) target = $region12
    $region11: #{tpu_custom_call.1} parent=5 // pred_region
      %s337 = ssub.s32 %s19, 1
      // Predicated region
      $region13: #{tpu_custom_call.1} parent=11 // pred_check
        %p338 = pneg %p66
      $region14: #{tpu_custom_call.1} parent=11 // pred_check_branch
        %340 = sbr.rel (%p338) target = $region16
      $region15: #{tpu_custom_call.1} parent=11 // pred_region
        _
      $region16: #{tpu_custom_call.1} parent=11 // pred_fallthru
        _
      // Predicated region
      $region17: #{tpu_custom_call.1} parent=11 // pred_check
        %p341 = pneg %p87
      $region18: #{tpu_custom_call.1} parent=11 // pred_check_branch
        %343 = sbr.rel (%p341) target = $region20
      $region19: #{tpu_custom_call.1} parent=11 // pred_region
        _
      $region20: #{tpu_custom_call.1} parent=11 // pred_fallthru
        _
      // Predicated region
      $region21: #{tpu_custom_call.1} parent=11 // pred_check
        %p344 = pneg %p108
      $region22: #{tpu_custom_call.1} parent=11 // pred_check_branch
        %346 = sbr.rel (%p344) target = $region24
      $region23: #{tpu_custom_call.1} parent=11 // pred_region
        _
      $region24: #{tpu_custom_call.1} parent=11 // pred_fallthru
        _
      // Predicated region
      $region25: #{tpu_custom_call.1} parent=11 // pred_check
        %p347 = pneg %p129
      $region26: #{tpu_custom_call.1} parent=11 // pred_check_branch
        %349 = sbr.rel (%p347) target = $region28
      $region27: #{tpu_custom_call.1} parent=11 // pred_region
        _
      $region28: #{tpu_custom_call.1} parent=11 // pred_fallthru
        _
      // Predicated region
      $region29: #{tpu_custom_call.1} parent=11 // pred_check
        %p350 = pneg %p150
      $region30: #{tpu_custom_call.1} parent=11 // pred_check_branch
        %352 = sbr.rel (%p350) target = $region32
      $region31: #{tpu_custom_call.1} parent=11 // pred_region
        _
      $region32: #{tpu_custom_call.1} parent=11 // pred_fallthru
        _
      // Predicated region
      $region33: #{tpu_custom_call.1} parent=11 // pred_check
        %p353 = pneg %p171
      $region34: #{tpu_custom_call.1} parent=11 // pred_check_branch
        %355 = sbr.rel (%p353) target = $region36
      $region35: #{tpu_custom_call.1} parent=11 // pred_region
        _
      $region36: #{tpu_custom_call.1} parent=11 // pred_fallthru
        _
      // Predicated region
      $region37: #{tpu_custom_call.1} parent=11 // pred_check
        %p356 = pneg %p192
      $region38: #{tpu_custom_call.1} parent=11 // pred_check_branch
        %358 = sbr.rel (%p356) target = $region40
      $region39: #{tpu_custom_call.1} parent=11 // pred_region
        _
      $region40: #{tpu_custom_call.1} parent=11 // pred_fallthru
        _
      // Predicated region
      $region41: #{tpu_custom_call.1} parent=11 // pred_check
        %p359 = pneg %p213
      $region42: #{tpu_custom_call.1} parent=11 // pred_check_branch
        %361 = sbr.rel (%p359) target = $region44
      $region43: #{tpu_custom_call.1} parent=11 // pred_region
        _
      $region44: #{tpu_custom_call.1} parent=11 // pred_fallthru
        _
      // Predicated region
      $region45: #{tpu_custom_call.1} parent=11 // pred_check
        %p362 = pneg %p234
      $region46: #{tpu_custom_call.1} parent=11 // pred_check_branch
        %364 = sbr.rel (%p362) target = $region48
      $region47: #{tpu_custom_call.1} parent=11 // pred_region
        _
      $region48: #{tpu_custom_call.1} parent=11 // pred_fallthru
        _
      // Predicated region
      $region49: #{tpu_custom_call.1} parent=11 // pred_check
        %p365 = pneg %p255
      $region50: #{tpu_custom_call.1} parent=11 // pred_check_branch
        %367 = sbr.rel (%p365) target = $region52
      $region51: #{tpu_custom_call.1} parent=11 // pred_region
        _
      $region52: #{tpu_custom_call.1} parent=11 // pred_fallthru
        _
      // Predicated region
      $region53: #{tpu_custom_call.1} parent=11 // pred_check
        %p368 = pneg %p276
      $region54: #{tpu_custom_call.1} parent=11 // pred_check_branch
        %370 = sbr.rel (%p368) target = $region56
      $region55: #{tpu_custom_call.1} parent=11 // pred_region
        _
      $region56: #{tpu_custom_call.1} parent=11 // pred_fallthru
        _
      // Predicated region
      $region57: #{tpu_custom_call.1} parent=11 // pred_check
        %p371 = pneg %p297
      $region58: #{tpu_custom_call.1} parent=11 // pred_check_branch
        %373 = sbr.rel (%p371) target = $region60
      $region59: #{tpu_custom_call.1} parent=11 // pred_region
        _
      $region60: #{tpu_custom_call.1} parent=11 // pred_fallthru
        _
    $region12: #{tpu_custom_call.1} parent=5 // pred_fallthru
      _
    %p374 = scmp.lt.s32.totalorder %s19, 5
    // Predicated region
    $region61: #{tpu_custom_call.1} parent=5 // pred_check
      %p375 = pneg %p374
    $region62: #{tpu_custom_call.1} parent=5 // pred_check_branch
      %377 = sbr.rel (%p375) target = $region64
    $region63: #{tpu_custom_call.1} parent=5 // pred_region
      // Predicated region
      $region65: #{tpu_custom_call.1} parent=63 // pred_check
        %p378 = pneg %p39
      $region66: #{tpu_custom_call.1} parent=63 // pred_check_branch
        %380 = sbr.rel (%p378) target = $region68
      $region67: #{tpu_custom_call.1} parent=63 // pred_region
        %s381 = smul.u32 2, %s19
        %p382 = scmp.lt.s32.totalorder %s381, 9
        %s383 = scalar_select %p382, %s381, 9
        %s384 = smul.addr %s383, 8
        %s385 = scalar_lea.vmem %s0, %s384
        %s386 = smul.u32 2, %s19
      $region68: #{tpu_custom_call.1} parent=63 // pred_fallthru
        _
    $region64: #{tpu_custom_call.1} parent=5 // pred_fallthru
      _
    %p387 = scmp.le.s32.totalorder 1, %s19
    %p388 = scmp.lt.s32.totalorder %s19, 6
    %p389 = pnand %p387, %p388
    %p390 = pneg %p389
    // Predicated region
    $region69: #{tpu_custom_call.1} parent=5 // pred_check
      _
    $region70: #{tpu_custom_call.1} parent=5 // pred_check_branch
      %392 = sbr.rel (%p389) target = $region72
    $region71: #{tpu_custom_call.1} parent=5 // pred_region
      %s393 = ssub.s32 %s19, 1
      %s394 = smul.u32 2, %s24
      %p395 = scmp.lt.s32.totalorder %s394, 9
      %s396 = scalar_select %p395, %s394, 9
      %s397 = smul.addr %s396, 8
      %s398 = scalar_lea.vmem %s0, %s397
      %p399 = pneg %p45
      %p400 = pneg %p42
      %p401 = pneg %p66
      %p402 = pneg %p63
      %p403 = pneg %p87
      %p404 = pneg %p84
      %p405 = pneg %p108
      %p406 = pneg %p105
      %p407 = pneg %p129
      %p408 = pneg %p126
      %p409 = pneg %p150
      %p410 = pneg %p147
      %p411 = pneg %p171
      %p412 = pneg %p168
      %p413 = pneg %p192
      %p414 = pneg %p189
      %p415 = pneg %p213
      %p416 = pneg %p210
      %p417 = pneg %p234
      %p418 = pneg %p231
      %p419 = pneg %p255
      %p420 = pneg %p252
      %p421 = pneg %p276
      %p422 = pneg %p273
      %p423 = pneg %p297
      %p424 = pneg %p294
      %p425 = pneg %p323
      %p426 = pneg %p320
      %s427 = smul.u32 2, %s24
      %p428 = scmp.lt.s32.totalorder %s427, 9
      %s429 = scalar_select %p428, %s427, 9
      %s430 = smul.addr %s429, 8
      %s431 = scalar_lea.vmem %s13, %s430
      %s432 = smul.u32 2, %s24
      %p433 = scmp.lt.s32.totalorder %s432, 9
      %s434 = scalar_select %p433, %s432, 9
      %s435 = smul.addr %s434, 8
      %s436 = scalar_lea.vmem %s0, %s435
      %s437 = smul.u32 2, %s24
      %s438 = smul.u32 2, %s24
      %p439 = scmp.lt.s32.totalorder %s438, 9
      %s440 = scalar_select %p439, %s438, 9
      %s441 = smul.addr %s440, 8
      %s442 = scalar_lea.vmem %s13, %s441
      %s443 = smul.u32 2, %s24
      %v444 = vld [vmem:[%s436] sm:$0xff]
      %v445 = vld [vmem:[%s436 + $0x8] sm:$0xff]
      %v446 = vld [vmem:[%s1] sm:$0xff]
      %v447 = vld [vmem:[%s1 + $0x8] sm:$0xff]
      %v448 = vld [vmem:[%s1 + $0x10] sm:$0xff]
      %v449 = vld [vmem:[%s1 + $0x18] sm:$0xff]
      %v450 = vld [vmem:[%s2] sm:$0x1]
      %v452 = vlaneseq
      %v453 = vshrl.u32 %v452, 7
      %v454 = vsub.s32 0, %v453
      %v455 = vrot.slane %v450, %v454
      %vm457 = vcmask 261120
      %v459 = vsel %vm457, %v444, 0
      %v462 = vsel %vm457, %v445, 0
      %464 = vmatprep.subr.mxu0 0.0
      %465 = vmatpush1.msra.mxu0 0.0
      %466 = vmatprep.subr.mxu0 0.0
      %467 = vmatpush1.msra.mxu0 0.0
      %468 = vmatprep.subr.mxu0 0.0
      %469 = vmatpush1.msra.mxu0 0.0
      %470 = vmatprep.subr.mxu0 0.0
      %471 = vmatpush1.msra.mxu0 0.0
      %472 = vmatprep.subr.mxu0 0.0
      %473 = vmatpush1.msra.mxu0 0.0
      %474 = vmatprep.subr.mxu0 0.0
      %475 = vmatpush1.msra.mxu0 0.0
      %476 = vmatprep.subr.mxu0 0.0
      %477 = vmatpush1.msra.mxu0 0.0
      %478 = vmatprep.subr.mxu0 0.0
      %479 = vmatpush1.msra.mxu0 0.0
      %480 = vmatprep.subr.mxu0 0.0
      %481 = vmatpush1.msra.mxu0 0.0
      %482 = vmatprep.subr.mxu0 0.0
      %483 = vmatpush1.msra.mxu0 0.0
      %484 = vmatprep.subr.mxu0 0.0
      %485 = vmatpush1.msra.mxu0 0.0
      %486 = vmatprep.subr.mxu0 0.0
      %487 = vmatpush1.msra.mxu0 0.0
      %488 = vmatprep.subr.mxu0 0.0
      %v489 = vand.u32 %v449, 4294901760
      %490 = vmatpush1.msra.mxu0 %v489
      %491 = vmatprep.subr.mxu0 0.0
      %v492 = vand.u32 %v448, 4294901760
      %493 = vmatpush1.msra.mxu0 %v492
      %494 = vmatprep.subr.mxu0 0.0
      %v495 = vand.u32 %v447, 4294901760
      %496 = vmatpush1.msra.mxu0 %v495
      %497 = vmatprep.subr.mxu0 0.0
      %v498 = vand.u32 %v446, 4294901760
      %499 = vmatpush1.msra.mxu0 %v498
      %500 = vmatprep.subr.mxu0 0.0
      %501 = vmatpush2.msra.mxu0 0.0
      %502 = vmatprep.subr.mxu0 0.0
      %503 = vmatpush2.msra.mxu0 0.0
      %504 = vmatprep.subr.mxu0 0.0
      %505 = vmatpush2.msra.mxu0 0.0
      %506 = vmatprep.subr.mxu0 0.0
      %507 = vmatpush2.msra.mxu0 0.0
      %508 = vmatprep.subr.mxu0 0.0
      %509 = vmatpush2.msra.mxu0 0.0
      %510 = vmatprep.subr.mxu0 0.0
      %511 = vmatpush2.msra.mxu0 0.0
      %512 = vmatprep.subr.mxu0 0.0
      %513 = vmatpush2.msra.mxu0 0.0
      %514 = vmatprep.subr.mxu0 0.0
      %515 = vmatpush2.msra.mxu0 0.0
      %516 = vmatprep.subr.mxu0 0.0
      %517 = vmatpush2.msra.mxu0 0.0
      %518 = vmatprep.subr.mxu0 0.0
      %519 = vmatpush2.msra.mxu0 0.0
      %520 = vmatprep.subr.mxu0 0.0
      %521 = vmatpush2.msra.mxu0 0.0
      %522 = vmatprep.subr.mxu0 0.0
      %523 = vmatpush2.msra.mxu0 0.0
      %524 = vmatprep.subr.mxu0 0.0
      %525 = vmatpush2.msra.mxu0 0.0
      %526 = vmatprep.subr.mxu0 0.0
      %527 = vmatpush2.msra.mxu0 0.0
      %528 = vmatprep.subr.mxu0 0.0
      %529 = vmatpush2.msra.mxu0 0.0
      %530 = vmatprep.subr.mxu0 0.0
      %531 = vmatpush2.msra.mxu0 0.0
      %532 = vmatprep.mubr.f32.mxu0 0.0
      %v533 = vand.u32 %v459, 4294901760
      %v534 = vsub.f32 %v459, %v533
      %v535 = vand.u32 %v534, 4294901760
      %v536 = vsub.f32 %v534, %v535
      %v537 = vand.u32 %v536, 4294901760
      %538 = vmatmul.mubr.f32.gmra.mxu0 %v537
      %v539 = vpop.f32.mrf.mxu0
      %v540 = vadd.f32 %v455, %v539
      %v541 = vpop.f32.mrf.mxu0
      %542 = vmatprep.mubr.f32.mxu0 0.0
      %v543 = vand.u32 %v462, 4294901760
      %v544 = vsub.f32 %v462, %v543
      %v545 = vand.u32 %v544, 4294901760
      %v546 = vsub.f32 %v544, %v545
      %v547 = vand.u32 %v546, 4294901760
      %548 = vmatmul.mubr.f32.gmra.mxu0 %v547
      %v549 = vpop.f32.mrf.mxu0
      %v550 = vadd.f32 %v455, %v549
      %v551 = vpop.f32.mrf.mxu0
      %552 = vdwg.mxu0
      %553 = vmatprep.subr.mxu0 0.0
      %554 = vmatpush1.msra.mxu0 0.0
      %555 = vmatprep.subr.mxu0 0.0
      %556 = vmatpush1.msra.mxu0 0.0
      %557 = vmatprep.subr.mxu0 0.0
      %558 = vmatpush1.msra.mxu0 0.0
      %559 = vmatprep.subr.mxu0 0.0
      %560 = vmatpush1.msra.mxu0 0.0
      %561 = vmatprep.subr.mxu0 0.0
      %562 = vmatpush1.msra.mxu0 0.0
      %563 = vmatprep.subr.mxu0 0.0
      %564 = vmatpush1.msra.mxu0 0.0
      %565 = vmatprep.subr.mxu0 0.0
      %566 = vmatpush1.msra.mxu0 0.0
      %567 = vmatprep.subr.mxu0 0.0
      %568 = vmatpush1.msra.mxu0 0.0
      %569 = vmatprep.subr.mxu0 0.0
      %570 = vmatpush1.msra.mxu0 0.0
      %571 = vmatprep.subr.mxu0 0.0
      %572 = vmatpush1.msra.mxu0 0.0
      %573 = vmatprep.subr.mxu0 0.0
      %574 = vmatpush1.msra.mxu0 0.0
      %575 = vmatprep.subr.mxu0 0.0
      %576 = vmatpush1.msra.mxu0 0.0
      %577 = vmatprep.subr.mxu0 0.0
      %v578 = vand.u32 %v449, 4294901760
      %v579 = vsub.f32 %v449, %v578
      %v580 = vand.u32 %v579, 4294901760
      %v581 = vsub.f32 %v579, %v580
      %v582 = vand.u32 %v581, 4294901760
      %583 = vmatpush1.msra.mxu0 %v582
      %584 = vmatprep.subr.mxu0 0.0
      %v585 = vand.u32 %v448, 4294901760
      %v586 = vsub.f32 %v448, %v585
      %v587 = vand.u32 %v586, 4294901760
      %v588 = vsub.f32 %v586, %v587
      %v589 = vand.u32 %v588, 4294901760
      %590 = vmatpush1.msra.mxu0 %v589
      %591 = vmatprep.subr.mxu0 0.0
      %v592 = vand.u32 %v447, 4294901760
      %v593 = vsub.f32 %v447, %v592
      %v594 = vand.u32 %v593, 4294901760
      %v595 = vsub.f32 %v593, %v594
      %v596 = vand.u32 %v595, 4294901760
      %597 = vmatpush1.msra.mxu0 %v596
      %598 = vmatprep.subr.mxu0 0.0
      %v599 = vand.u32 %v446, 4294901760
      %v600 = vsub.f32 %v446, %v599
      %v601 = vand.u32 %v600, 4294901760
      %v602 = vsub.f32 %v600, %v601
      %v603 = vand.u32 %v602, 4294901760
      %604 = vmatpush1.msra.mxu0 %v603
      %605 = vmatprep.subr.mxu0 0.0
      %606 = vmatpush2.msra.mxu0 0.0
      %607 = vmatprep.subr.mxu0 0.0
      %608 = vmatpush2.msra.mxu0 0.0
      %609 = vmatprep.subr.mxu0 0.0
      %610 = vmatpush2.msra.mxu0 0.0
      %611 = vmatprep.subr.mxu0 0.0
      %612 = vmatpush2.msra.mxu0 0.0
      %613 = vmatprep.subr.mxu0 0.0
      %614 = vmatpush2.msra.mxu0 0.0
      %615 = vmatprep.subr.mxu0 0.0
      %616 = vmatpush2.msra.mxu0 0.0
      %617 = vmatprep.subr.mxu0 0.0
      %618 = vmatpush2.msra.mxu0 0.0
      %619 = vmatprep.subr.mxu0 0.0
      %620 = vmatpush2.msra.mxu0 0.0
      %621 = vmatprep.subr.mxu0 0.0
      %622 = vmatpush2.msra.mxu0 0.0
      %623 = vmatprep.subr.mxu0 0.0
      %624 = vmatpush2.msra.mxu0 0.0
      %625 = vmatprep.subr.mxu0 0.0
      %626 = vmatpush2.msra.mxu0 0.0
      %627 = vmatprep.subr.mxu0 0.0
      %628 = vmatpush2.msra.mxu0 0.0
      %629 = vmatprep.subr.mxu0 0.0
      %630 = vmatpush2.msra.mxu0 0.0
      %631 = vmatprep.subr.mxu0 0.0
      %632 = vmatpush2.msra.mxu0 0.0
      %633 = vmatprep.subr.mxu0 0.0
      %634 = vmatpush2.msra.mxu0 0.0
      %635 = vmatprep.subr.mxu0 0.0
      %636 = vmatpush2.msra.mxu0 0.0
      %637 = vmatprep.mubr.f32.mxu0 0.0
      %v638 = vand.u32 %v459, 4294901760
      %639 = vmatmul.mubr.f32.gmra.mxu0 %v638
      %v640 = vpop.f32.mrf.mxu0
      %v641 = vadd.f32 %v540, %v640
      %v642 = vpop.f32.mrf.mxu0
      %643 = vmatprep.mubr.f32.mxu0 0.0
      %v644 = vand.u32 %v462, 4294901760
      %645 = vmatmul.mubr.f32.gmra.mxu0 %v644
      %v646 = vpop.f32.mrf.mxu0
      %v647 = vadd.f32 %v550, %v646
      %v648 = vpop.f32.mrf.mxu0
      %649 = vdwg.mxu0
      %650 = vmatprep.subr.mxu0 0.0
      %651 = vmatpush1.msra.mxu0 0.0
      %652 = vmatprep.subr.mxu0 0.0
      %653 = vmatpush1.msra.mxu0 0.0
      %654 = vmatprep.subr.mxu0 0.0
      %655 = vmatpush1.msra.mxu0 0.0
      %656 = vmatprep.subr.mxu0 0.0
      %657 = vmatpush1.msra.mxu0 0.0
      %658 = vmatprep.subr.mxu0 0.0
      %659 = vmatpush1.msra.mxu0 0.0
      %660 = vmatprep.subr.mxu0 0.0
      %661 = vmatpush1.msra.mxu0 0.0
      %662 = vmatprep.subr.mxu0 0.0
      %663 = vmatpush1.msra.mxu0 0.0
      %664 = vmatprep.subr.mxu0 0.0
      %665 = vmatpush1.msra.mxu0 0.0
      %666 = vmatprep.subr.mxu0 0.0
      %667 = vmatpush1.msra.mxu0 0.0
      %668 = vmatprep.subr.mxu0 0.0
      %669 = vmatpush1.msra.mxu0 0.0
      %670 = vmatprep.subr.mxu0 0.0
      %671 = vmatpush1.msra.mxu0 0.0
      %672 = vmatprep.subr.mxu0 0.0
      %673 = vmatpush1.msra.mxu0 0.0
      %674 = vmatprep.subr.mxu0 0.0
      %v675 = vand.u32 %v449, 4294901760
      %v676 = vsub.f32 %v449, %v675
      %677 = vmatpush1.msra.mxu0 %v676
      %678 = vmatprep.subr.mxu0 0.0
      %v679 = vand.u32 %v448, 4294901760
      %v680 = vsub.f32 %v448, %v679
      %681 = vmatpush1.msra.mxu0 %v680
      %682 = vmatprep.subr.mxu0 0.0
      %v683 = vand.u32 %v447, 4294901760
      %v684 = vsub.f32 %v447, %v683
      %685 = vmatpush1.msra.mxu0 %v684
      %686 = vmatprep.subr.mxu0 0.0
      %v687 = vand.u32 %v446, 4294901760
      %v688 = vsub.f32 %v446, %v687
      %689 = vmatpush1.msra.mxu0 %v688
      %690 = vmatprep.subr.mxu0 0.0
      %691 = vmatpush2.msra.mxu0 0.0
      %692 = vmatprep.subr.mxu0 0.0
      %693 = vmatpush2.msra.mxu0 0.0
      %694 = vmatprep.subr.mxu0 0.0
      %695 = vmatpush2.msra.mxu0 0.0
      %696 = vmatprep.subr.mxu0 0.0
      %697 = vmatpush2.msra.mxu0 0.0
      %698 = vmatprep.subr.mxu0 0.0
      %699 = vmatpush2.msra.mxu0 0.0
      %700 = vmatprep.subr.mxu0 0.0
      %701 = vmatpush2.msra.mxu0 0.0
      %702 = vmatprep.subr.mxu0 0.0
      %703 = vmatpush2.msra.mxu0 0.0
      %704 = vmatprep.subr.mxu0 0.0
      %705 = vmatpush2.msra.mxu0 0.0
      %706 = vmatprep.subr.mxu0 0.0
      %707 = vmatpush2.msra.mxu0 0.0
      %708 = vmatprep.subr.mxu0 0.0
      %709 = vmatpush2.msra.mxu0 0.0
      %710 = vmatprep.subr.mxu0 0.0
      %711 = vmatpush2.msra.mxu0 0.0
      %712 = vmatprep.subr.mxu0 0.0
      %713 = vmatpush2.msra.mxu0 0.0
      %714 = vmatprep.subr.mxu0 0.0
      %715 = vmatpush2.msra.mxu0 0.0
      %716 = vmatprep.subr.mxu0 0.0
      %717 = vmatpush2.msra.mxu0 0.0
      %718 = vmatprep.subr.mxu0 0.0
      %719 = vmatpush2.msra.mxu0 0.0
      %720 = vmatprep.subr.mxu0 0.0
      %721 = vmatpush2.msra.mxu0 0.0
      %722 = vmatprep.mubr.f32.mxu0 0.0
      %v723 = vand.u32 %v459, 4294901760
      %v724 = vsub.f32 %v459, %v723
      %725 = vmatmul.mubr.f32.gmra.mxu0 %v724
      %v726 = vpop.f32.mrf.mxu0
      %v727 = vadd.f32 %v641, %v726
      %v728 = vpop.f32.mrf.mxu0
      %729 = vmatprep.mubr.f32.mxu0 0.0
      %v730 = vand.u32 %v462, 4294901760
      %v731 = vsub.f32 %v462, %v730
      %732 = vmatmul.mubr.f32.gmra.mxu0 %v731
      %v733 = vpop.f32.mrf.mxu0
      %v734 = vadd.f32 %v647, %v733
      %v735 = vpop.f32.mrf.mxu0
      %736 = vdwg.mxu0
      %737 = vmatprep.subr.mxu0 0.0
      %738 = vmatpush1.msra.mxu0 0.0
      %739 = vmatprep.subr.mxu0 0.0
      %740 = vmatpush1.msra.mxu0 0.0
      %741 = vmatprep.subr.mxu0 0.0
      %742 = vmatpush1.msra.mxu0 0.0
      %743 = vmatprep.subr.mxu0 0.0
      %744 = vmatpush1.msra.mxu0 0.0
      %745 = vmatprep.subr.mxu0 0.0
      %746 = vmatpush1.msra.mxu0 0.0
      %747 = vmatprep.subr.mxu0 0.0
      %748 = vmatpush1.msra.mxu0 0.0
      %749 = vmatprep.subr.mxu0 0.0
      %750 = vmatpush1.msra.mxu0 0.0
      %751 = vmatprep.subr.mxu0 0.0
      %752 = vmatpush1.msra.mxu0 0.0
      %753 = vmatprep.subr.mxu0 0.0
      %754 = vmatpush1.msra.mxu0 0.0
      %755 = vmatprep.subr.mxu0 0.0
      %756 = vmatpush1.msra.mxu0 0.0
      %757 = vmatprep.subr.mxu0 0.0
      %758 = vmatpush1.msra.mxu0 0.0
      %759 = vmatprep.subr.mxu0 0.0
      %760 = vmatpush1.msra.mxu0 0.0
      %761 = vmatprep.subr.mxu0 0.0
      %v762 = vand.u32 %v449, 4294901760
      %763 = vmatpush1.msra.mxu0 %v762
      %764 = vmatprep.subr.mxu0 0.0
      %v765 = vand.u32 %v448, 4294901760
      %766 = vmatpush1.msra.mxu0 %v765
      %767 = vmatprep.subr.mxu0 0.0
      %v768 = vand.u32 %v447, 4294901760
      %769 = vmatpush1.msra.mxu0 %v768
      %770 = vmatprep.subr.mxu0 0.0
      %v771 = vand.u32 %v446, 4294901760
      %772 = vmatpush1.msra.mxu0 %v771
      %773 = vmatprep.subr.mxu0 0.0
      %774 = vmatpush2.msra.mxu0 0.0
      %775 = vmatprep.subr.mxu0 0.0
      %776 = vmatpush2.msra.mxu0 0.0
      %777 = vmatprep.subr.mxu0 0.0
      %778 = vmatpush2.msra.mxu0 0.0
      %779 = vmatprep.subr.mxu0 0.0
      %780 = vmatpush2.msra.mxu0 0.0
      %781 = vmatprep.subr.mxu0 0.0
      %782 = vmatpush2.msra.mxu0 0.0
      %783 = vmatprep.subr.mxu0 0.0
      %784 = vmatpush2.msra.mxu0 0.0
      %785 = vmatprep.subr.mxu0 0.0
      %786 = vmatpush2.msra.mxu0 0.0
      %787 = vmatprep.subr.mxu0 0.0
      %788 = vmatpush2.msra.mxu0 0.0
      %789 = vmatprep.subr.mxu0 0.0
      %790 = vmatpush2.msra.mxu0 0.0
      %791 = vmatprep.subr.mxu0 0.0
      %792 = vmatpush2.msra.mxu0 0.0
      %793 = vmatprep.subr.mxu0 0.0
      %794 = vmatpush2.msra.mxu0 0.0
      %795 = vmatprep.subr.mxu0 0.0
      %796 = vmatpush2.msra.mxu0 0.0
      %797 = vmatprep.subr.mxu0 0.0
      %798 = vmatpush2.msra.mxu0 0.0
      %799 = vmatprep.subr.mxu0 0.0
      %800 = vmatpush2.msra.mxu0 0.0
      %801 = vmatprep.subr.mxu0 0.0
      %802 = vmatpush2.msra.mxu0 0.0
      %803 = vmatprep.subr.mxu0 0.0
      %804 = vmatpush2.msra.mxu0 0.0
      %805 = vmatprep.mubr.f32.mxu0 0.0
      %v806 = vand.u32 %v459, 4294901760
      %v807 = vsub.f32 %v459, %v806
      %v808 = vand.u32 %v807, 4294901760
      %809 = vmatmul.mubr.f32.gmra.mxu0 %v808
      %v810 = vpop.f32.mrf.mxu0
      %v811 = vadd.f32 %v727, %v810
      %v812 = vpop.f32.mrf.mxu0
      %813 = vmatprep.mubr.f32.mxu0 0.0
      %v814 = vand.u32 %v462, 4294901760
      %v815 = vsub.f32 %v462, %v814
      %v816 = vand.u32 %v815, 4294901760
      %817 = vmatmul.mubr.f32.gmra.mxu0 %v816
      %v818 = vpop.f32.mrf.mxu0
      %v819 = vadd.f32 %v734, %v818
      %v820 = vpop.f32.mrf.mxu0
      %821 = vdwg.mxu0
      %822 = vmatprep.subr.mxu0 0.0
      %823 = vmatpush1.msra.mxu0 0.0
      %824 = vmatprep.subr.mxu0 0.0
      %825 = vmatpush1.msra.mxu0 0.0
      %826 = vmatprep.subr.mxu0 0.0
      %827 = vmatpush1.msra.mxu0 0.0
      %828 = vmatprep.subr.mxu0 0.0
      %829 = vmatpush1.msra.mxu0 0.0
      %830 = vmatprep.subr.mxu0 0.0
      %831 = vmatpush1.msra.mxu0 0.0
      %832 = vmatprep.subr.mxu0 0.0
      %833 = vmatpush1.msra.mxu0 0.0
      %834 = vmatprep.subr.mxu0 0.0
      %835 = vmatpush1.msra.mxu0 0.0
      %836 = vmatprep.subr.mxu0 0.0
      %837 = vmatpush1.msra.mxu0 0.0
      %838 = vmatprep.subr.mxu0 0.0
      %839 = vmatpush1.msra.mxu0 0.0
      %840 = vmatprep.subr.mxu0 0.0
      %841 = vmatpush1.msra.mxu0 0.0
      %842 = vmatprep.subr.mxu0 0.0
      %843 = vmatpush1.msra.mxu0 0.0
      %844 = vmatprep.subr.mxu0 0.0
      %845 = vmatpush1.msra.mxu0 0.0
      %846 = vmatprep.subr.mxu0 0.0
      %v847 = vand.u32 %v449, 4294901760
      %v848 = vsub.f32 %v449, %v847
      %v849 = vand.u32 %v848, 4294901760
      %850 = vmatpush1.msra.mxu0 %v849
      %851 = vmatprep.subr.mxu0 0.0
      %v852 = vand.u32 %v448, 4294901760
      %v853 = vsub.f32 %v448, %v852
      %v854 = vand.u32 %v853, 4294901760
      %855 = vmatpush1.msra.mxu0 %v854
      %856 = vmatprep.subr.mxu0 0.0
      %v857 = vand.u32 %v447, 4294901760
      %v858 = vsub.f32 %v447, %v857
      %v859 = vand.u32 %v858, 4294901760
      %860 = vmatpush1.msra.mxu0 %v859
      %861 = vmatprep.subr.mxu0 0.0
      %v862 = vand.u32 %v446, 4294901760
      %v863 = vsub.f32 %v446, %v862
      %v864 = vand.u32 %v863, 4294901760
      %865 = vmatpush1.msra.mxu0 %v864
      %866 = vmatprep.subr.mxu0 0.0
      %867 = vmatpush2.msra.mxu0 0.0
      %868 = vmatprep.subr.mxu0 0.0
      %869 = vmatpush2.msra.mxu0 0.0
      %870 = vmatprep.subr.mxu0 0.0
      %871 = vmatpush2.msra.mxu0 0.0
      %872 = vmatprep.subr.mxu0 0.0
      %873 = vmatpush2.msra.mxu0 0.0
      %874 = vmatprep.subr.mxu0 0.0
      %875 = vmatpush2.msra.mxu0 0.0
      %876 = vmatprep.subr.mxu0 0.0
      %877 = vmatpush2.msra.mxu0 0.0
      %878 = vmatprep.subr.mxu0 0.0
      %879 = vmatpush2.msra.mxu0 0.0
      %880 = vmatprep.subr.mxu0 0.0
      %881 = vmatpush2.msra.mxu0 0.0
      %882 = vmatprep.subr.mxu0 0.0
      %883 = vmatpush2.msra.mxu0 0.0
      %884 = vmatprep.subr.mxu0 0.0
      %885 = vmatpush2.msra.mxu0 0.0
      %886 = vmatprep.subr.mxu0 0.0
      %887 = vmatpush2.msra.mxu0 0.0
      %888 = vmatprep.subr.mxu0 0.0
      %889 = vmatpush2.msra.mxu0 0.0
      %890 = vmatprep.subr.mxu0 0.0
      %891 = vmatpush2.msra.mxu0 0.0
      %892 = vmatprep.subr.mxu0 0.0
      %893 = vmatpush2.msra.mxu0 0.0
      %894 = vmatprep.subr.mxu0 0.0
      %895 = vmatpush2.msra.mxu0 0.0
      %896 = vmatprep.subr.mxu0 0.0
      %897 = vmatpush2.msra.mxu0 0.0
      %898 = vmatprep.mubr.f32.mxu0 0.0
      %v899 = vand.u32 %v459, 4294901760
      %900 = vmatmul.mubr.f32.gmra.mxu0 %v899
      %v901 = vpop.f32.mrf.mxu0
      %v902 = vadd.f32 %v811, %v901
      %v903 = vpop.f32.mrf.mxu0
      %904 = vmatprep.mubr.f32.mxu0 0.0
      %v905 = vand.u32 %v462, 4294901760
      %906 = vmatmul.mubr.f32.gmra.mxu0 %v905
      %v907 = vpop.f32.mrf.mxu0
      %v908 = vadd.f32 %v819, %v907
      %v909 = vpop.f32.mrf.mxu0
      %910 = vdwg.mxu0
      %911 = vmatprep.subr.mxu0 0.0
      %912 = vmatpush1.msra.mxu0 0.0
      %913 = vmatprep.subr.mxu0 0.0
      %914 = vmatpush1.msra.mxu0 0.0
      %915 = vmatprep.subr.mxu0 0.0
      %916 = vmatpush1.msra.mxu0 0.0
      %917 = vmatprep.subr.mxu0 0.0
      %918 = vmatpush1.msra.mxu0 0.0
      %919 = vmatprep.subr.mxu0 0.0
      %920 = vmatpush1.msra.mxu0 0.0
      %921 = vmatprep.subr.mxu0 0.0
      %922 = vmatpush1.msra.mxu0 0.0
      %923 = vmatprep.subr.mxu0 0.0
      %924 = vmatpush1.msra.mxu0 0.0
      %925 = vmatprep.subr.mxu0 0.0
      %926 = vmatpush1.msra.mxu0 0.0
      %927 = vmatprep.subr.mxu0 0.0
      %928 = vmatpush1.msra.mxu0 0.0
      %929 = vmatprep.subr.mxu0 0.0
      %930 = vmatpush1.msra.mxu0 0.0
      %931 = vmatprep.subr.mxu0 0.0
      %932 = vmatpush1.msra.mxu0 0.0
      %933 = vmatprep.subr.mxu0 0.0
      %934 = vmatpush1.msra.mxu0 0.0
      %935 = vmatprep.subr.mxu0 0.0
      %v936 = vand.u32 %v449, 4294901760
      %937 = vmatpush1.msra.mxu0 %v936
      %938 = vmatprep.subr.mxu0 0.0
      %v939 = vand.u32 %v448, 4294901760
      %940 = vmatpush1.msra.mxu0 %v939
      %941 = vmatprep.subr.mxu0 0.0
      %v942 = vand.u32 %v447, 4294901760
      %943 = vmatpush1.msra.mxu0 %v942
      %944 = vmatprep.subr.mxu0 0.0
      %v945 = vand.u32 %v446, 4294901760
      %946 = vmatpush1.msra.mxu0 %v945
      %947 = vmatprep.subr.mxu0 0.0
      %948 = vmatpush2.msra.mxu0 0.0
      %949 = vmatprep.subr.mxu0 0.0
      %950 = vmatpush2.msra.mxu0 0.0
      %951 = vmatprep.subr.mxu0 0.0
      %952 = vmatpush2.msra.mxu0 0.0
      %953 = vmatprep.subr.mxu0 0.0
      %954 = vmatpush2.msra.mxu0 0.0
      %955 = vmatprep.subr.mxu0 0.0
      %956 = vmatpush2.msra.mxu0 0.0
      %957 = vmatprep.subr.mxu0 0.0
      %958 = vmatpush2.msra.mxu0 0.0
      %959 = vmatprep.subr.mxu0 0.0
      %960 = vmatpush2.msra.mxu0 0.0
      %961 = vmatprep.subr.mxu0 0.0
      %962 = vmatpush2.msra.mxu0 0.0
      %963 = vmatprep.subr.mxu0 0.0
      %964 = vmatpush2.msra.mxu0 0.0
      %965 = vmatprep.subr.mxu0 0.0
      %966 = vmatpush2.msra.mxu0 0.0
      %967 = vmatprep.subr.mxu0 0.0
      %968 = vmatpush2.msra.mxu0 0.0
      %969 = vmatprep.subr.mxu0 0.0
      %970 = vmatpush2.msra.mxu0 0.0
      %971 = vmatprep.subr.mxu0 0.0
      %972 = vmatpush2.msra.mxu0 0.0
      %973 = vmatprep.subr.mxu0 0.0
      %974 = vmatpush2.msra.mxu0 0.0
      %975 = vmatprep.subr.mxu0 0.0
      %976 = vmatpush2.msra.mxu0 0.0
      %977 = vmatprep.subr.mxu0 0.0
      %978 = vmatpush2.msra.mxu0 0.0
      %979 = vmatprep.mubr.f32.mxu0 0.0
      %v980 = vand.u32 %v459, 4294901760
      %981 = vmatmul.mubr.f32.gmra.mxu0 %v980
      %v982 = vpop.f32.mrf.mxu0
      %v983 = vadd.f32 %v902, %v982
      %v984 = vpop.f32.mrf.mxu0
      %985 = vmatprep.mubr.f32.mxu0 0.0
      %v986 = vand.u32 %v462, 4294901760
      %987 = vmatmul.mubr.f32.gmra.mxu0 %v986
      %v988 = vpop.f32.mrf.mxu0
      %v989 = vadd.f32 %v908, %v988
      %v990 = vpop.f32.mrf.mxu0
      %991 = vdwg.mxu0
      %v992 = vmul.f32 %v983, 0.5
      %v993 = vmul.f32 %v989, 0.5
      %v994 = vmul.f32 %v983, 0.70710677
      %v995 = vmul.f32 %v989, 0.70710677
      %v996 = vand.u32 2147483647, %v994
      %v997 = vand.u32 2147483647, %v995
      %v998 = vmul.f32 %v996, 0.3275911
      %v999 = vmul.f32 %v997, 0.3275911
      %v1000 = vadd.f32 %v998, 1.0
      %v1001 = vadd.f32 %v999, 1.0
      %v1002 = vrcp.pop %v1000
      %v1003 = vmul.f32 1.0, %v1002
      %v1004 = vrcp.pop %v1001
      %v1005 = vmul.f32 1.0, %v1004
      %v1006 = vmul.f32 %v1003, 1.0614054
      %v1007 = vmul.f32 %v1005, 1.0614054
      %v1008 = vadd.f32 %v1006, -1.4531521
      %v1009 = vadd.f32 %v1007, -1.4531521
      %v1010 = vmul.f32 %v1008, %v1003
      %v1011 = vmul.f32 %v1009, %v1005
      %v1012 = vadd.f32 %v1010, 1.4214138
      %v1013 = vadd.f32 %v1011, 1.4214138
      %v1014 = vmul.f32 %v1012, %v1003
      %v1015 = vmul.f32 %v1013, %v1005
      %v1016 = vadd.f32 %v1014, -0.28449672
      %v1017 = vadd.f32 %v1015, -0.28449672
      %v1018 = vmul.f32 %v1016, %v1003
      %v1019 = vmul.f32 %v1017, %v1005
      %v1020 = vadd.f32 %v1018, 0.2548296
      %v1021 = vadd.f32 %v1019, 0.2548296
      %v1022 = vmul.f32 %v1020, %v1003
      %v1023 = vmul.f32 %v1021, %v1005
      %v1024 = vsub.f32 0.0, %v996
      %v1025 = vsub.f32 0.0, %v997
      %v1026 = vmul.f32 %v1024, %v996
      %v1027 = vmul.f32 %v1025, %v997
      %v1028 = vmul.f32 %v1026, 1.442695
      %v1029 = vpow.pop %v1028
      %v1030 = vmul.f32 %v1027, 1.442695
      %v1031 = vpow.pop %v1030
      %v1032 = vmul.f32 %v1022, %v1029
      %v1033 = vmul.f32 %v1023, %v1031
      %v1034 = vsub.f32 1.0, %v1032
      %v1035 = vsub.f32 1.0, %v1033
      %vm1036 = vcmp.lt.f32.partialorder %v994, 0.0
      %vm1037 = vcmp.lt.f32.partialorder %v995, 0.0
      %v1038 = vsub.f32 0.0, %v1034
      %v1039 = vsub.f32 0.0, %v1035
      %v1040 = vsel %vm1036, %v1038, %v1034
      %v1041 = vsel %vm1037, %v1039, %v1035
      %v1042 = vadd.f32 %v1040, 1.0
      %v1043 = vadd.f32 %v1041, 1.0
      %v1044 = vmul.f32 %v992, %v1042
      %v1045 = vmul.f32 %v993, %v1043
      %v1046 = vld [vmem:[%s3] sm:$0x1]
      %v1047 = vld [vmem:[%s4] sm:$0x1]
      %vm1048 = vcmask 523264
      %v1049 = vsel %vm1048, %v1044, 0.0
      %1050 = vadd.xlane.f32.xlu0 %v1049
      %v1051 = vpop.xlane.xlu0 %1050
      %v1052 = vsel %vm1048, %v1045, 0.0
      %1053 = vadd.xlane.f32.xlu0 %v1052
      %v1054 = vpop.xlane.xlu0 %1053
      %v1055 = vrcp.pop 64.0
      %v1056 = vmul.f32 %v1051, %v1055
      %v1057 = vmul.f32 %v1054, %v1055
      %v1058 = vsub.f32 %v1044, %v1056
      %v1059 = vsub.f32 %v1045, %v1057
      %v1060 = vmul.f32 %v1058, %v1058
      %v1061 = vmul.f32 %v1059, %v1059
      %v1062 = vsel %vm1048, %v1060, 0.0
      %1063 = vadd.xlane.f32.xlu0 %v1062
      %v1064 = vpop.xlane.xlu0 %1063
      %v1065 = vsel %vm1048, %v1061, 0.0
      %1066 = vadd.xlane.f32.xlu0 %v1065
      %v1067 = vpop.xlane.xlu0 %1066
      %v1068 = vmul.f32 %v1064, %v1055
      %v1069 = vmul.f32 %v1067, %v1055
      %v1070 = vadd.f32 %v1068, 1e-05
      %v1071 = vadd.f32 %v1069, 1e-05
      %v1072 = vrsqrt.pop %v1070
      %v1073 = vrsqrt.pop %v1071
      %v1074 = vmul.f32 %v1058, %v1072
      %v1075 = vmul.f32 %v1059, %v1073
      %v1077 = vlaneseq
      %v1078 = vshrl.u32 %v1077, 7
      %v1079 = vsub.s32 0, %v1078
      %v1080 = vrot.slane %v1046, %v1079
      %v1082 = vmul.f32 %v1074, %v1080
      %v1083 = vmul.f32 %v1075, %v1080
      %v1085 = vlaneseq
      %v1086 = vshrl.u32 %v1085, 7
      %v1087 = vsub.s32 0, %v1086
      %v1088 = vrot.slane %v1047, %v1087
      %v1090 = vadd.f32 %v1082, %v1088
      %v1091 = vadd.f32 %v1083, %v1088
      %v1092 = vld [vmem:[%s5] sm:$0xff]
      %v1093 = vld [vmem:[%s5 + $0x8] sm:$0xff]
      %v1094 = vld [vmem:[%s5 + $0x10] sm:$0xff]
      %v1095 = vld [vmem:[%s5 + $0x18] sm:$0xff]
      %v1096 = vld [vmem:[%s5 + $0x20] sm:$0xff]
      %v1097 = vld [vmem:[%s5 + $0x28] sm:$0xff]
      %v1098 = vld [vmem:[%s5 + $0x30] sm:$0xff]
      %v1099 = vld [vmem:[%s5 + $0x38] sm:$0xff]
      %v1100 = vld [vmem:[%s6] sm:$0x1]
      %v1102 = vlaneseq
      %v1103 = vshrl.u32 %v1102, 7
      %v1104 = vsub.s32 0, %v1103
      %v1105 = vrot.slane %v1100, %v1104
      %v1108 = vsel %vm1048, %v1090, 0
      %v1111 = vsel %vm1048, %v1091, 0
      %1113 = vmatprep.subr.mxu0 0.0
      %1114 = vmatpush1.msra.mxu0 0.0
      %1115 = vmatprep.subr.mxu0 0.0
      %1116 = vmatpush1.msra.mxu0 0.0
      %1117 = vmatprep.subr.mxu0 0.0
      %1118 = vmatpush1.msra.mxu0 0.0
      %1119 = vmatprep.subr.mxu0 0.0
      %1120 = vmatpush1.msra.mxu0 0.0
      %1121 = vmatprep.subr.mxu0 0.0
      %1122 = vmatpush1.msra.mxu0 0.0
      %1123 = vmatprep.subr.mxu0 0.0
      %1124 = vmatpush1.msra.mxu0 0.0
      %1125 = vmatprep.subr.mxu0 0.0
      %1126 = vmatpush1.msra.mxu0 0.0
      %1127 = vmatprep.subr.mxu0 0.0
      %1128 = vmatpush1.msra.mxu0 0.0
      %1129 = vmatprep.subr.mxu0 0.0
      %v1130 = vand.u32 %v1099, 4294901760
      %1131 = vmatpush1.msra.mxu0 %v1130
      %1132 = vmatprep.subr.mxu0 0.0
      %v1133 = vand.u32 %v1098, 4294901760
      %1134 = vmatpush1.msra.mxu0 %v1133
      %1135 = vmatprep.subr.mxu0 0.0
      %v1136 = vand.u32 %v1097, 4294901760
      %1137 = vmatpush1.msra.mxu0 %v1136
      %1138 = vmatprep.subr.mxu0 0.0
      %v1139 = vand.u32 %v1096, 4294901760
      %1140 = vmatpush1.msra.mxu0 %v1139
      %1141 = vmatprep.subr.mxu0 0.0
      %v1142 = vand.u32 %v1095, 4294901760
      %1143 = vmatpush1.msra.mxu0 %v1142
      %1144 = vmatprep.subr.mxu0 0.0
      %v1145 = vand.u32 %v1094, 4294901760
      %1146 = vmatpush1.msra.mxu0 %v1145
      %1147 = vmatprep.subr.mxu0 0.0
      %v1148 = vand.u32 %v1093, 4294901760
      %1149 = vmatpush1.msra.mxu0 %v1148
      %1150 = vmatprep.subr.mxu0 0.0
      %v1151 = vand.u32 %v1092, 4294901760
      %1152 = vmatpush1.msra.mxu0 %v1151
      %1153 = vmatprep.subr.mxu0 0.0
      %1154 = vmatpush2.msra.mxu0 0.0
      %1155 = vmatprep.subr.mxu0 0.0
      %1156 = vmatpush2.msra.mxu0 0.0
      %1157 = vmatprep.subr.mxu0 0.0
      %1158 = vmatpush2.msra.mxu0 0.0
      %1159 = vmatprep.subr.mxu0 0.0
      %1160 = vmatpush2.msra.mxu0 0.0
      %1161 = vmatprep.subr.mxu0 0.0
      %1162 = vmatpush2.msra.mxu0 0.0
      %1163 = vmatprep.subr.mxu0 0.0
      %1164 = vmatpush2.msra.mxu0 0.0
      %1165 = vmatprep.subr.mxu0 0.0
      %1166 = vmatpush2.msra.mxu0 0.0
      %1167 = vmatprep.subr.mxu0 0.0
      %1168 = vmatpush2.msra.mxu0 0.0
      %1169 = vmatprep.subr.mxu0 0.0
      %1170 = vmatpush2.msra.mxu0 0.0
      %1171 = vmatprep.subr.mxu0 0.0
      %1172 = vmatpush2.msra.mxu0 0.0
      %1173 = vmatprep.subr.mxu0 0.0
      %1174 = vmatpush2.msra.mxu0 0.0
      %1175 = vmatprep.subr.mxu0 0.0
      %1176 = vmatpush2.msra.mxu0 0.0
      %1177 = vmatprep.subr.mxu0 0.0
      %1178 = vmatpush2.msra.mxu0 0.0
      %1179 = vmatprep.subr.mxu0 0.0
      %1180 = vmatpush2.msra.mxu0 0.0
      %1181 = vmatprep.subr.mxu0 0.0
      %1182 = vmatpush2.msra.mxu0 0.0
      %1183 = vmatprep.subr.mxu0 0.0
      %1184 = vmatpush2.msra.mxu0 0.0
      %1185 = vmatprep.mubr.f32.mxu0 0.0
      %v1186 = vand.u32 %v1108, 4294901760
      %v1187 = vsub.f32 %v1108, %v1186
      %v1188 = vand.u32 %v1187, 4294901760
      %v1189 = vsub.f32 %v1187, %v1188
      %v1190 = vand.u32 %v1189, 4294901760
      %1191 = vmatmul.mubr.f32.gmra.mxu0 %v1190
      %v1192 = vpop.f32.mrf.mxu0
      %v1193 = vadd.f32 %v1105, %v1192
      %v1194 = vpop.f32.mrf.mxu0
      %1195 = vmatprep.mubr.f32.mxu0 0.0
      %v1196 = vand.u32 %v1111, 4294901760
      %v1197 = vsub.f32 %v1111, %v1196
      %v1198 = vand.u32 %v1197, 4294901760
      %v1199 = vsub.f32 %v1197, %v1198
      %v1200 = vand.u32 %v1199, 4294901760
      %1201 = vmatmul.mubr.f32.gmra.mxu0 %v1200
      %v1202 = vpop.f32.mrf.mxu0
      %v1203 = vadd.f32 %v1105, %v1202
      %v1204 = vpop.f32.mrf.mxu0
      %1205 = vdwg.mxu0
      %1206 = vmatprep.subr.mxu0 0.0
      %1207 = vmatpush1.msra.mxu0 0.0
      %1208 = vmatprep.subr.mxu0 0.0
      %1209 = vmatpush1.msra.mxu0 0.0
      %1210 = vmatprep.subr.mxu0 0.0
      %1211 = vmatpush1.msra.mxu0 0.0
      %1212 = vmatprep.subr.mxu0 0.0
      %1213 = vmatpush1.msra.mxu0 0.0
      %1214 = vmatprep.subr.mxu0 0.0
      %1215 = vmatpush1.msra.mxu0 0.0
      %1216 = vmatprep.subr.mxu0 0.0
      %1217 = vmatpush1.msra.mxu0 0.0
      %1218 = vmatprep.subr.mxu0 0.0
      %1219 = vmatpush1.msra.mxu0 0.0
      %1220 = vmatprep.subr.mxu0 0.0
      %1221 = vmatpush1.msra.mxu0 0.0
      %1222 = vmatprep.subr.mxu0 0.0
      %v1223 = vand.u32 %v1099, 4294901760
      %v1224 = vsub.f32 %v1099, %v1223
      %v1225 = vand.u32 %v1224, 4294901760
      %v1226 = vsub.f32 %v1224, %v1225
      %v1227 = vand.u32 %v1226, 4294901760
      %1228 = vmatpush1.msra.mxu0 %v1227
      %1229 = vmatprep.subr.mxu0 0.0
      %v1230 = vand.u32 %v1098, 4294901760
      %v1231 = vsub.f32 %v1098, %v1230
      %v1232 = vand.u32 %v1231, 4294901760
      %v1233 = vsub.f32 %v1231, %v1232
      %v1234 = vand.u32 %v1233, 4294901760
      %1235 = vmatpush1.msra.mxu0 %v1234
      %1236 = vmatprep.subr.mxu0 0.0
      %v1237 = vand.u32 %v1097, 4294901760
      %v1238 = vsub.f32 %v1097, %v1237
      %v1239 = vand.u32 %v1238, 4294901760
      %v1240 = vsub.f32 %v1238, %v1239
      %v1241 = vand.u32 %v1240, 4294901760
      %1242 = vmatpush1.msra.mxu0 %v1241
      %1243 = vmatprep.subr.mxu0 0.0
      %v1244 = vand.u32 %v1096, 4294901760
      %v1245 = vsub.f32 %v1096, %v1244
      %v1246 = vand.u32 %v1245, 4294901760
      %v1247 = vsub.f32 %v1245, %v1246
      %v1248 = vand.u32 %v1247, 4294901760
      %1249 = vmatpush1.msra.mxu0 %v1248
      %1250 = vmatprep.subr.mxu0 0.0
      %v1251 = vand.u32 %v1095, 4294901760
      %v1252 = vsub.f32 %v1095, %v1251
      %v1253 = vand.u32 %v1252, 4294901760
      %v1254 = vsub.f32 %v1252, %v1253
      %v1255 = vand.u32 %v1254, 4294901760
      %1256 = vmatpush1.msra.mxu0 %v1255
      %1257 = vmatprep.subr.mxu0 0.0
      %v1258 = vand.u32 %v1094, 4294901760
      %v1259 = vsub.f32 %v1094, %v1258
      %v1260 = vand.u32 %v1259, 4294901760
      %v1261 = vsub.f32 %v1259, %v1260
      %v1262 = vand.u32 %v1261, 4294901760
      %1263 = vmatpush1.msra.mxu0 %v1262
      %1264 = vmatprep.subr.mxu0 0.0
      %v1265 = vand.u32 %v1093, 4294901760
      %v1266 = vsub.f32 %v1093, %v1265
      %v1267 = vand.u32 %v1266, 4294901760
      %v1268 = vsub.f32 %v1266, %v1267
      %v1269 = vand.u32 %v1268, 4294901760
      %1270 = vmatpush1.msra.mxu0 %v1269
      %1271 = vmatprep.subr.mxu0 0.0
      %v1272 = vand.u32 %v1092, 4294901760
      %v1273 = vsub.f32 %v1092, %v1272
      %v1274 = vand.u32 %v1273, 4294901760
      %v1275 = vsub.f32 %v1273, %v1274
      %v1276 = vand.u32 %v1275, 4294901760
      %1277 = vmatpush1.msra.mxu0 %v1276
      %1278 = vmatprep.subr.mxu0 0.0
      %1279 = vmatpush2.msra.mxu0 0.0
      %1280 = vmatprep.subr.mxu0 0.0
      %1281 = vmatpush2.msra.mxu0 0.0
      %1282 = vmatprep.subr.mxu0 0.0
      %1283 = vmatpush2.msra.mxu0 0.0
      %1284 = vmatprep.subr.mxu0 0.0
      %1285 = vmatpush2.msra.mxu0 0.0
      %1286 = vmatprep.subr.mxu0 0.0
      %1287 = vmatpush2.msra.mxu0 0.0
      %1288 = vmatprep.subr.mxu0 0.0
      %1289 = vmatpush2.msra.mxu0 0.0
      %1290 = vmatprep.subr.mxu0 0.0
      %1291 = vmatpush2.msra.mxu0 0.0
      %1292 = vmatprep.subr.mxu0 0.0
      %1293 = vmatpush2.msra.mxu0 0.0
      %1294 = vmatprep.subr.mxu0 0.0
      %1295 = vmatpush2.msra.mxu0 0.0
      %1296 = vmatprep.subr.mxu0 0.0
      %1297 = vmatpush2.msra.mxu0 0.0
      %1298 = vmatprep.subr.mxu0 0.0
      %1299 = vmatpush2.msra.mxu0 0.0
      %1300 = vmatprep.subr.mxu0 0.0
      %1301 = vmatpush2.msra.mxu0 0.0
      %1302 = vmatprep.subr.mxu0 0.0
      %1303 = vmatpush2.msra.mxu0 0.0
      %1304 = vmatprep.subr.mxu0 0.0
      %1305 = vmatpush2.msra.mxu0 0.0
      %1306 = vmatprep.subr.mxu0 0.0
      %1307 = vmatpush2.msra.mxu0 0.0
      %1308 = vmatprep.subr.mxu0 0.0
      %1309 = vmatpush2.msra.mxu0 0.0
      %1310 = vmatprep.mubr.f32.mxu0 0.0
      %v1311 = vand.u32 %v1108, 4294901760
      %1312 = vmatmul.mubr.f32.gmra.mxu0 %v1311
      %v1313 = vpop.f32.mrf.mxu0
      %v1314 = vadd.f32 %v1193, %v1313
      %v1315 = vpop.f32.mrf.mxu0
      %1316 = vmatprep.mubr.f32.mxu0 0.0
      %v1317 = vand.u32 %v1111, 4294901760
      %1318 = vmatmul.mubr.f32.gmra.mxu0 %v1317
      %v1319 = vpop.f32.mrf.mxu0
      %v1320 = vadd.f32 %v1203, %v1319
      %v1321 = vpop.f32.mrf.mxu0
      %1322 = vdwg.mxu0
      %1323 = vmatprep.subr.mxu0 0.0
      %1324 = vmatpush1.msra.mxu0 0.0
      %1325 = vmatprep.subr.mxu0 0.0
      %1326 = vmatpush1.msra.mxu0 0.0
      %1327 = vmatprep.subr.mxu0 0.0
      %1328 = vmatpush1.msra.mxu0 0.0
      %1329 = vmatprep.subr.mxu0 0.0
      %1330 = vmatpush1.msra.mxu0 0.0
      %1331 = vmatprep.subr.mxu0 0.0
      %1332 = vmatpush1.msra.mxu0 0.0
      %1333 = vmatprep.subr.mxu0 0.0
      %1334 = vmatpush1.msra.mxu0 0.0
      %1335 = vmatprep.subr.mxu0 0.0
      %1336 = vmatpush1.msra.mxu0 0.0
      %1337 = vmatprep.subr.mxu0 0.0
      %1338 = vmatpush1.msra.mxu0 0.0
      %1339 = vmatprep.subr.mxu0 0.0
      %v1340 = vand.u32 %v1099, 4294901760
      %v1341 = vsub.f32 %v1099, %v1340
      %1342 = vmatpush1.msra.mxu0 %v1341
      %1343 = vmatprep.subr.mxu0 0.0
      %v1344 = vand.u32 %v1098, 4294901760
      %v1345 = vsub.f32 %v1098, %v1344
      %1346 = vmatpush1.msra.mxu0 %v1345
      %1347 = vmatprep.subr.mxu0 0.0
      %v1348 = vand.u32 %v1097, 4294901760
      %v1349 = vsub.f32 %v1097, %v1348
      %1350 = vmatpush1.msra.mxu0 %v1349
      %1351 = vmatprep.subr.mxu0 0.0
      %v1352 = vand.u32 %v1096, 4294901760
      %v1353 = vsub.f32 %v1096, %v1352
      %1354 = vmatpush1.msra.mxu0 %v1353
      %1355 = vmatprep.subr.mxu0 0.0
      %v1356 = vand.u32 %v1095, 4294901760
      %v1357 = vsub.f32 %v1095, %v1356
      %1358 = vmatpush1.msra.mxu0 %v1357
      %1359 = vmatprep.subr.mxu0 0.0
      %v1360 = vand.u32 %v1094, 4294901760
      %v1361 = vsub.f32 %v1094, %v1360
      %1362 = vmatpush1.msra.mxu0 %v1361
      %1363 = vmatprep.subr.mxu0 0.0
      %v1364 = vand.u32 %v1093, 4294901760
      %v1365 = vsub.f32 %v1093, %v1364
      %1366 = vmatpush1.msra.mxu0 %v1365
      %1367 = vmatprep.subr.mxu0 0.0
      %v1368 = vand.u32 %v1092, 4294901760
      %v1369 = vsub.f32 %v1092, %v1368
      %1370 = vmatpush1.msra.mxu0 %v1369
      %1371 = vmatprep.subr.mxu0 0.0
      %1372 = vmatpush2.msra.mxu0 0.0
      %1373 = vmatprep.subr.mxu0 0.0
      %1374 = vmatpush2.msra.mxu0 0.0
      %1375 = vmatprep.subr.mxu0 0.0
      %1376 = vmatpush2.msra.mxu0 0.0
      %1377 = vmatprep.subr.mxu0 0.0
      %1378 = vmatpush2.msra.mxu0 0.0
      %1379 = vmatprep.subr.mxu0 0.0
      %1380 = vmatpush2.msra.mxu0 0.0
      %1381 = vmatprep.subr.mxu0 0.0
      %1382 = vmatpush2.msra.mxu0 0.0
      %1383 = vmatprep.subr.mxu0 0.0
      %1384 = vmatpush2.msra.mxu0 0.0
      %1385 = vmatprep.subr.mxu0 0.0
      %1386 = vmatpush2.msra.mxu0 0.0
      %1387 = vmatprep.subr.mxu0 0.0
      %1388 = vmatpush2.msra.mxu0 0.0
      %1389 = vmatprep.subr.mxu0 0.0
      %1390 = vmatpush2.msra.mxu0 0.0
      %1391 = vmatprep.subr.mxu0 0.0
      %1392 = vmatpush2.msra.mxu0 0.0
      %1393 = vmatprep.subr.mxu0 0.0
      %1394 = vmatpush2.msra.mxu0 0.0
      %1395 = vmatprep.subr.mxu0 0.0
      %1396 = vmatpush2.msra.mxu0 0.0
      %1397 = vmatprep.subr.mxu0 0.0
      %1398 = vmatpush2.msra.mxu0 0.0
      %1399 = vmatprep.subr.mxu0 0.0
      %1400 = vmatpush2.msra.mxu0 0.0
      %1401 = vmatprep.subr.mxu0 0.0
      %1402 = vmatpush2.msra.mxu0 0.0
      %1403 = vmatprep.mubr.f32.mxu0 0.0
      %v1404 = vand.u32 %v1108, 4294901760
      %v1405 = vsub.f32 %v1108, %v1404
      %1406 = vmatmul.mubr.f32.gmra.mxu0 %v1405
      %v1407 = vpop.f32.mrf.mxu0
      %v1408 = vadd.f32 %v1314, %v1407
      %v1409 = vpop.f32.mrf.mxu0
      %1410 = vmatprep.mubr.f32.mxu0 0.0
      %v1411 = vand.u32 %v1111, 4294901760
      %v1412 = vsub.f32 %v1111, %v1411
      %1413 = vmatmul.mubr.f32.gmra.mxu0 %v1412
      %v1414 = vpop.f32.mrf.mxu0
      %v1415 = vadd.f32 %v1320, %v1414
      %v1416 = vpop.f32.mrf.mxu0
      %1417 = vdwg.mxu0
      %1418 = vmatprep.subr.mxu0 0.0
      %1419 = vmatpush1.msra.mxu0 0.0
      %1420 = vmatprep.subr.mxu0 0.0
      %1421 = vmatpush1.msra.mxu0 0.0
      %1422 = vmatprep.subr.mxu0 0.0
      %1423 = vmatpush1.msra.mxu0 0.0
      %1424 = vmatprep.subr.mxu0 0.0
      %1425 = vmatpush1.msra.mxu0 0.0
      %1426 = vmatprep.subr.mxu0 0.0
      %1427 = vmatpush1.msra.mxu0 0.0
      %1428 = vmatprep.subr.mxu0 0.0
      %1429 = vmatpush1.msra.mxu0 0.0
      %1430 = vmatprep.subr.mxu0 0.0
      %1431 = vmatpush1.msra.mxu0 0.0
      %1432 = vmatprep.subr.mxu0 0.0
      %1433 = vmatpush1.msra.mxu0 0.0
      %1434 = vmatprep.subr.mxu0 0.0
      %v1435 = vand.u32 %v1099, 4294901760
      %1436 = vmatpush1.msra.mxu0 %v1435
      %1437 = vmatprep.subr.mxu0 0.0
      %v1438 = vand.u32 %v1098, 4294901760
      %1439 = vmatpush1.msra.mxu0 %v1438
      %1440 = vmatprep.subr.mxu0 0.0
      %v1441 = vand.u32 %v1097, 4294901760
      %1442 = vmatpush1.msra.mxu0 %v1441
      %1443 = vmatprep.subr.mxu0 0.0
      %v1444 = vand.u32 %v1096, 4294901760
      %1445 = vmatpush1.msra.mxu0 %v1444
      %1446 = vmatprep.subr.mxu0 0.0
      %v1447 = vand.u32 %v1095, 4294901760
      %1448 = vmatpush1.msra.mxu0 %v1447
      %1449 = vmatprep.subr.mxu0 0.0
      %v1450 = vand.u32 %v1094, 4294901760
      %1451 = vmatpush1.msra.mxu0 %v1450
      %1452 = vmatprep.subr.mxu0 0.0
      %v1453 = vand.u32 %v1093, 4294901760
      %1454 = vmatpush1.msra.mxu0 %v1453
      %1455 = vmatprep.subr.mxu0 0.0
      %v1456 = vand.u32 %v1092, 4294901760
      %1457 = vmatpush1.msra.mxu0 %v1456
      %1458 = vmatprep.subr.mxu0 0.0
      %1459 = vmatpush2.msra.mxu0 0.0
      %1460 = vmatprep.subr.mxu0 0.0
      %1461 = vmatpush2.msra.mxu0 0.0
      %1462 = vmatprep.subr.mxu0 0.0
      %1463 = vmatpush2.msra.mxu0 0.0
      %1464 = vmatprep.subr.mxu0 0.0
      %1465 = vmatpush2.msra.mxu0 0.0
      %1466 = vmatprep.subr.mxu0 0.0
      %1467 = vmatpush2.msra.mxu0 0.0
      %1468 = vmatprep.subr.mxu0 0.0
      %1469 = vmatpush2.msra.mxu0 0.0
      %1470 = vmatprep.subr.mxu0 0.0
      %1471 = vmatpush2.msra.mxu0 0.0
      %1472 = vmatprep.subr.mxu0 0.0
      %1473 = vmatpush2.msra.mxu0 0.0
      %1474 = vmatprep.subr.mxu0 0.0
      %1475 = vmatpush2.msra.mxu0 0.0
      %1476 = vmatprep.subr.mxu0 0.0
      %1477 = vmatpush2.msra.mxu0 0.0
      %1478 = vmatprep.subr.mxu0 0.0
      %1479 = vmatpush2.msra.mxu0 0.0
      %1480 = vmatprep.subr.mxu0 0.0
      %1481 = vmatpush2.msra.mxu0 0.0
      %1482 = vmatprep.subr.mxu0 0.0
      %1483 = vmatpush2.msra.mxu0 0.0
      %1484 = vmatprep.subr.mxu0 0.0
      %1485 = vmatpush2.msra.mxu0 0.0
      %1486 = vmatprep.subr.mxu0 0.0
      %1487 = vmatpush2.msra.mxu0 0.0
      %1488 = vmatprep.subr.mxu0 0.0
      %1489 = vmatpush2.msra.mxu0 0.0
      %1490 = vmatprep.mubr.f32.mxu0 0.0
      %v1491 = vand.u32 %v1108, 4294901760
      %v1492 = vsub.f32 %v1108, %v1491
      %v1493 = vand.u32 %v1492, 4294901760
      %1494 = vmatmul.mubr.f32.gmra.mxu0 %v1493
      %v1495 = vpop.f32.mrf.mxu0
      %v1496 = vadd.f32 %v1408, %v1495
      %v1497 = vpop.f32.mrf.mxu0
      %1498 = vmatprep.mubr.f32.mxu0 0.0
      %v1499 = vand.u32 %v1111, 4294901760
      %v1500 = vsub.f32 %v1111, %v1499
      %v1501 = vand.u32 %v1500, 4294901760
      %1502 = vmatmul.mubr.f32.gmra.mxu0 %v1501
      %v1503 = vpop.f32.mrf.mxu0
      %v1504 = vadd.f32 %v1415, %v1503
      %v1505 = vpop.f32.mrf.mxu0
      %1506 = vdwg.mxu0
      %1507 = vmatprep.subr.mxu0 0.0
      %1508 = vmatpush1.msra.mxu0 0.0
      %1509 = vmatprep.subr.mxu0 0.0
      %1510 = vmatpush1.msra.mxu0 0.0
      %1511 = vmatprep.subr.mxu0 0.0
      %1512 = vmatpush1.msra.mxu0 0.0
      %1513 = vmatprep.subr.mxu0 0.0
      %1514 = vmatpush1.msra.mxu0 0.0
      %1515 = vmatprep.subr.mxu0 0.0
      %1516 = vmatpush1.msra.mxu0 0.0
      %1517 = vmatprep.subr.mxu0 0.0
      %1518 = vmatpush1.msra.mxu0 0.0
      %1519 = vmatprep.subr.mxu0 0.0
      %1520 = vmatpush1.msra.mxu0 0.0
      %1521 = vmatprep.subr.mxu0 0.0
      %1522 = vmatpush1.msra.mxu0 0.0
      %1523 = vmatprep.subr.mxu0 0.0
      %v1524 = vand.u32 %v1099, 4294901760
      %v1525 = vsub.f32 %v1099, %v1524
      %v1526 = vand.u32 %v1525, 4294901760
      %1527 = vmatpush1.msra.mxu0 %v1526
      %1528 = vmatprep.subr.mxu0 0.0
      %v1529 = vand.u32 %v1098, 4294901760
      %v1530 = vsub.f32 %v1098, %v1529
      %v1531 = vand.u32 %v1530, 4294901760
      %1532 = vmatpush1.msra.mxu0 %v1531
      %1533 = vmatprep.subr.mxu0 0.0
      %v1534 = vand.u32 %v1097, 4294901760
      %v1535 = vsub.f32 %v1097, %v1534
      %v1536 = vand.u32 %v1535, 4294901760
      %1537 = vmatpush1.msra.mxu0 %v1536
      %1538 = vmatprep.subr.mxu0 0.0
      %v1539 = vand.u32 %v1096, 4294901760
      %v1540 = vsub.f32 %v1096, %v1539
      %v1541 = vand.u32 %v1540, 4294901760
      %1542 = vmatpush1.msra.mxu0 %v1541
      %1543 = vmatprep.subr.mxu0 0.0
      %v1544 = vand.u32 %v1095, 4294901760
      %v1545 = vsub.f32 %v1095, %v1544
      %v1546 = vand.u32 %v1545, 4294901760
      %1547 = vmatpush1.msra.mxu0 %v1546
      %1548 = vmatprep.subr.mxu0 0.0
      %v1549 = vand.u32 %v1094, 4294901760
      %v1550 = vsub.f32 %v1094, %v1549
      %v1551 = vand.u32 %v1550, 4294901760
      %1552 = vmatpush1.msra.mxu0 %v1551
      %1553 = vmatprep.subr.mxu0 0.0
      %v1554 = vand.u32 %v1093, 4294901760
      %v1555 = vsub.f32 %v1093, %v1554
      %v1556 = vand.u32 %v1555, 4294901760
      %1557 = vmatpush1.msra.mxu0 %v1556
      %1558 = vmatprep.subr.mxu0 0.0
      %v1559 = vand.u32 %v1092, 4294901760
      %v1560 = vsub.f32 %v1092, %v1559
      %v1561 = vand.u32 %v1560, 4294901760
      %1562 = vmatpush1.msra.mxu0 %v1561
      %1563 = vmatprep.subr.mxu0 0.0
      %1564 = vmatpush2.msra.mxu0 0.0
      %1565 = vmatprep.subr.mxu0 0.0
      %1566 = vmatpush2.msra.mxu0 0.0
      %1567 = vmatprep.subr.mxu0 0.0
      %1568 = vmatpush2.msra.mxu0 0.0
      %1569 = vmatprep.subr.mxu0 0.0
      %1570 = vmatpush2.msra.mxu0 0.0
      %1571 = vmatprep.subr.mxu0 0.0
      %1572 = vmatpush2.msra.mxu0 0.0
      %1573 = vmatprep.subr.mxu0 0.0
      %1574 = vmatpush2.msra.mxu0 0.0
      %1575 = vmatprep.subr.mxu0 0.0
      %1576 = vmatpush2.msra.mxu0 0.0
      %1577 = vmatprep.subr.mxu0 0.0
      %1578 = vmatpush2.msra.mxu0 0.0
      %1579 = vmatprep.subr.mxu0 0.0
      %1580 = vmatpush2.msra.mxu0 0.0
      %1581 = vmatprep.subr.mxu0 0.0
      %1582 = vmatpush2.msra.mxu0 0.0
      %1583 = vmatprep.subr.mxu0 0.0
      %1584 = vmatpush2.msra.mxu0 0.0
      %1585 = vmatprep.subr.mxu0 0.0
      %1586 = vmatpush2.msra.mxu0 0.0
      %1587 = vmatprep.subr.mxu0 0.0
      %1588 = vmatpush2.msra.mxu0 0.0
      %1589 = vmatprep.subr.mxu0 0.0
      %1590 = vmatpush2.msra.mxu0 0.0
      %1591 = vmatprep.subr.mxu0 0.0
      %1592 = vmatpush2.msra.mxu0 0.0
      %1593 = vmatprep.subr.mxu0 0.0
      %1594 = vmatpush2.msra.mxu0 0.0
      %1595 = vmatprep.mubr.f32.mxu0 0.0
      %v1596 = vand.u32 %v1108, 4294901760
      %1597 = vmatmul.mubr.f32.gmra.mxu0 %v1596
      %v1598 = vpop.f32.mrf.mxu0
      %v1599 = vadd.f32 %v1496, %v1598
      %v1600 = vpop.f32.mrf.mxu0
      %1601 = vmatprep.mubr.f32.mxu0 0.0
      %v1602 = vand.u32 %v1111, 4294901760
      %1603 = vmatmul.mubr.f32.gmra.mxu0 %v1602
      %v1604 = vpop.f32.mrf.mxu0
      %v1605 = vadd.f32 %v1504, %v1604
      %v1606 = vpop.f32.mrf.mxu0
      %1607 = vdwg.mxu0
      %1608 = vmatprep.subr.mxu0 0.0
      %1609 = vmatpush1.msra.mxu0 0.0
      %1610 = vmatprep.subr.mxu0 0.0
      %1611 = vmatpush1.msra.mxu0 0.0
      %1612 = vmatprep.subr.mxu0 0.0
      %1613 = vmatpush1.msra.mxu0 0.0
      %1614 = vmatprep.subr.mxu0 0.0
      %1615 = vmatpush1.msra.mxu0 0.0
      %1616 = vmatprep.subr.mxu0 0.0
      %1617 = vmatpush1.msra.mxu0 0.0
      %1618 = vmatprep.subr.mxu0 0.0
      %1619 = vmatpush1.msra.mxu0 0.0
      %1620 = vmatprep.subr.mxu0 0.0
      %1621 = vmatpush1.msra.mxu0 0.0
      %1622 = vmatprep.subr.mxu0 0.0
      %1623 = vmatpush1.msra.mxu0 0.0
      %1624 = vmatprep.subr.mxu0 0.0
      %v1625 = vand.u32 %v1099, 4294901760
      %1626 = vmatpush1.msra.mxu0 %v1625
      %1627 = vmatprep.subr.mxu0 0.0
      %v1628 = vand.u32 %v1098, 4294901760
      %1629 = vmatpush1.msra.mxu0 %v1628
      %1630 = vmatprep.subr.mxu0 0.0
      %v1631 = vand.u32 %v1097, 4294901760
      %1632 = vmatpush1.msra.mxu0 %v1631
      %1633 = vmatprep.subr.mxu0 0.0
      %v1634 = vand.u32 %v1096, 4294901760
      %1635 = vmatpush1.msra.mxu0 %v1634
      %1636 = vmatprep.subr.mxu0 0.0
      %v1637 = vand.u32 %v1095, 4294901760
      %1638 = vmatpush1.msra.mxu0 %v1637
      %1639 = vmatprep.subr.mxu0 0.0
      %v1640 = vand.u32 %v1094, 4294901760
      %1641 = vmatpush1.msra.mxu0 %v1640
      %1642 = vmatprep.subr.mxu0 0.0
      %v1643 = vand.u32 %v1093, 4294901760
      %1644 = vmatpush1.msra.mxu0 %v1643
      %1645 = vmatprep.subr.mxu0 0.0
      %v1646 = vand.u32 %v1092, 4294901760
      %1647 = vmatpush1.msra.mxu0 %v1646
      %1648 = vmatprep.subr.mxu0 0.0
      %1649 = vmatpush2.msra.mxu0 0.0
      %1650 = vmatprep.subr.mxu0 0.0
      %1651 = vmatpush2.msra.mxu0 0.0
      %1652 = vmatprep.subr.mxu0 0.0
      %1653 = vmatpush2.msra.mxu0 0.0
      %1654 = vmatprep.subr.mxu0 0.0
      %1655 = vmatpush2.msra.mxu0 0.0
      %1656 = vmatprep.subr.mxu0 0.0
      %1657 = vmatpush2.msra.mxu0 0.0
      %1658 = vmatprep.subr.mxu0 0.0
      %1659 = vmatpush2.msra.mxu0 0.0
      %1660 = vmatprep.subr.mxu0 0.0
      %1661 = vmatpush2.msra.mxu0 0.0
      %1662 = vmatprep.subr.mxu0 0.0
      %1663 = vmatpush2.msra.mxu0 0.0
      %1664 = vmatprep.subr.mxu0 0.0
      %1665 = vmatpush2.msra.mxu0 0.0
      %1666 = vmatprep.subr.mxu0 0.0
      %1667 = vmatpush2.msra.mxu0 0.0
      %1668 = vmatprep.subr.mxu0 0.0
      %1669 = vmatpush2.msra.mxu0 0.0
      %1670 = vmatprep.subr.mxu0 0.0
      %1671 = vmatpush2.msra.mxu0 0.0
      %1672 = vmatprep.subr.mxu0 0.0
      %1673 = vmatpush2.msra.mxu0 0.0
      %1674 = vmatprep.subr.mxu0 0.0
      %1675 = vmatpush2.msra.mxu0 0.0
      %1676 = vmatprep.subr.mxu0 0.0
      %1677 = vmatpush2.msra.mxu0 0.0
      %1678 = vmatprep.subr.mxu0 0.0
      %1679 = vmatpush2.msra.mxu0 0.0
      %1680 = vmatprep.mubr.f32.mxu0 0.0
      %v1681 = vand.u32 %v1108, 4294901760
      %1682 = vmatmul.mubr.f32.gmra.mxu0 %v1681
      %v1683 = vpop.f32.mrf.mxu0
      %v1684 = vadd.f32 %v1599, %v1683
      %v1685 = vpop.f32.mrf.mxu0
      %1686 = vmatprep.mubr.f32.mxu0 0.0
      %v1687 = vand.u32 %v1111, 4294901760
      %1688 = vmatmul.mubr.f32.gmra.mxu0 %v1687
      %v1689 = vpop.f32.mrf.mxu0
      %v1690 = vadd.f32 %v1605, %v1689
      %v1691 = vpop.f32.mrf.mxu0
      %1692 = vdwg.mxu0
      %v1693 = vmul.f32 %v1684, 0.5
      %v1694 = vmul.f32 %v1690, 0.5
      %v1695 = vmul.f32 %v1684, 0.70710677
      %v1696 = vmul.f32 %v1690, 0.70710677
      %v1697 = vand.u32 2147483647, %v1695
      %v1698 = vand.u32 2147483647, %v1696
      %v1699 = vmul.f32 %v1697, 0.3275911
      %v1700 = vmul.f32 %v1698, 0.3275911
      %v1701 = vadd.f32 %v1699, 1.0
      %v1702 = vadd.f32 %v1700, 1.0
      %v1703 = vrcp.pop %v1701
      %v1704 = vmul.f32 1.0, %v1703
      %v1705 = vrcp.pop %v1702
      %v1706 = vmul.f32 1.0, %v1705
      %v1707 = vmul.f32 %v1704, 1.0614054
      %v1708 = vmul.f32 %v1706, 1.0614054
      %v1709 = vadd.f32 %v1707, -1.4531521
      %v1710 = vadd.f32 %v1708, -1.4531521
      %v1711 = vmul.f32 %v1709, %v1704
      %v1712 = vmul.f32 %v1710, %v1706
      %v1713 = vadd.f32 %v1711, 1.4214138
      %v1714 = vadd.f32 %v1712, 1.4214138
      %v1715 = vmul.f32 %v1713, %v1704
      %v1716 = vmul.f32 %v1714, %v1706
      %v1717 = vadd.f32 %v1715, -0.28449672
      %v1718 = vadd.f32 %v1716, -0.28449672
      %v1719 = vmul.f32 %v1717, %v1704
      %v1720 = vmul.f32 %v1718, %v1706
      %v1721 = vadd.f32 %v1719, 0.2548296
      %v1722 = vadd.f32 %v1720, 0.2548296
      %v1723 = vmul.f32 %v1721, %v1704
      %v1724 = vmul.f32 %v1722, %v1706
      %v1725 = vsub.f32 0.0, %v1697
      %v1726 = vsub.f32 0.0, %v1698
      %v1727 = vmul.f32 %v1725, %v1697
      %v1728 = vmul.f32 %v1726, %v1698
      %v1729 = vmul.f32 %v1727, 1.442695
      %v1730 = vpow.pop %v1729
      %v1731 = vmul.f32 %v1728, 1.442695
      %v1732 = vpow.pop %v1731
      %v1733 = vmul.f32 %v1723, %v1730
      %v1734 = vmul.f32 %v1724, %v1732
      %v1735 = vsub.f32 1.0, %v1733
      %v1736 = vsub.f32 1.0, %v1734
      %vm1737 = vcmp.lt.f32.partialorder %v1695, 0.0
      %vm1738 = vcmp.lt.f32.partialorder %v1696, 0.0
      %v1739 = vsub.f32 0.0, %v1735
      %v1740 = vsub.f32 0.0, %v1736
      %v1741 = vsel %vm1737, %v1739, %v1735
      %v1742 = vsel %vm1738, %v1740, %v1736
      %v1743 = vadd.f32 %v1741, 1.0
      %v1744 = vadd.f32 %v1742, 1.0
      %v1745 = vmul.f32 %v1693, %v1743
      %v1746 = vmul.f32 %v1694, %v1744
      %v1747 = vld [vmem:[%s7] sm:$0x1]
      %v1748 = vld [vmem:[%s8] sm:$0x1]
      %v1749 = vsel %vm1048, %v1745, 0.0
      %1750 = vadd.xlane.f32.xlu0 %v1749
      %v1751 = vpop.xlane.xlu0 %1750
      %v1752 = vsel %vm1048, %v1746, 0.0
      %1753 = vadd.xlane.f32.xlu0 %v1752
      %v1754 = vpop.xlane.xlu0 %1753
      %v1755 = vmul.f32 %v1751, %v1055
      %v1756 = vmul.f32 %v1754, %v1055
      %v1757 = vsub.f32 %v1745, %v1755
      %v1758 = vsub.f32 %v1746, %v1756
      %v1759 = vmul.f32 %v1757, %v1757
      %v1760 = vmul.f32 %v1758, %v1758
      %v1761 = vsel %vm1048, %v1759, 0.0
      %1762 = vadd.xlane.f32.xlu0 %v1761
      %v1763 = vpop.xlane.xlu0 %1762
      %v1764 = vsel %vm1048, %v1760, 0.0
      %1765 = vadd.xlane.f32.xlu0 %v1764
      %v1766 = vpop.xlane.xlu0 %1765
      %v1767 = vmul.f32 %v1763, %v1055
      %v1768 = vmul.f32 %v1766, %v1055
      %v1769 = vadd.f32 %v1767, 1e-05
      %v1770 = vadd.f32 %v1768, 1e-05
      %v1771 = vrsqrt.pop %v1769
      %v1772 = vrsqrt.pop %v1770
      %v1773 = vmul.f32 %v1757, %v1771
      %v1774 = vmul.f32 %v1758, %v1772
      %v1776 = vlaneseq
      %v1777 = vshrl.u32 %v1776, 7
      %v1778 = vsub.s32 0, %v1777
      %v1779 = vrot.slane %v1747, %v1778
      %v1781 = vmul.f32 %v1773, %v1779
      %v1782 = vmul.f32 %v1774, %v1779
      %v1784 = vlaneseq
      %v1785 = vshrl.u32 %v1784, 7
      %v1786 = vsub.s32 0, %v1785
      %v1787 = vrot.slane %v1748, %v1786
      %v1789 = vadd.f32 %v1781, %v1787
      %v1790 = vadd.f32 %v1782, %v1787
      %v1791 = vld [vmem:[%s9] sm:$0xff]
      %v1792 = vld [vmem:[%s9 + $0x8] sm:$0xff]
      %v1793 = vld [vmem:[%s9 + $0x10] sm:$0xff]
      %v1794 = vld [vmem:[%s9 + $0x18] sm:$0xff]
      %v1795 = vld [vmem:[%s9 + $0x20] sm:$0xff]
      %v1796 = vld [vmem:[%s9 + $0x28] sm:$0xff]
      %v1797 = vld [vmem:[%s9 + $0x30] sm:$0xff]
      %v1798 = vld [vmem:[%s9 + $0x38] sm:$0xff]
      %v1799 = vld [vmem:[%s10] sm:$0x1]
      %v1801 = vlaneseq
      %v1802 = vshrl.u32 %v1801, 7
      %v1803 = vsub.s32 0, %v1802
      %v1804 = vrot.slane %v1799, %v1803
      %v1807 = vsel %vm1048, %v1789, 0
      %v1810 = vsel %vm1048, %v1790, 0
      %1812 = vmatprep.subr.mxu0 0.0
      %1813 = vmatpush1.msra.mxu0 0.0
      %1814 = vmatprep.subr.mxu0 0.0
      %1815 = vmatpush1.msra.mxu0 0.0
      %1816 = vmatprep.subr.mxu0 0.0
      %1817 = vmatpush1.msra.mxu0 0.0
      %1818 = vmatprep.subr.mxu0 0.0
      %1819 = vmatpush1.msra.mxu0 0.0
      %1820 = vmatprep.subr.mxu0 0.0
      %1821 = vmatpush1.msra.mxu0 0.0
      %1822 = vmatprep.subr.mxu0 0.0
      %1823 = vmatpush1.msra.mxu0 0.0
      %1824 = vmatprep.subr.mxu0 0.0
      %1825 = vmatpush1.msra.mxu0 0.0
      %1826 = vmatprep.subr.mxu0 0.0
      %1827 = vmatpush1.msra.mxu0 0.0
      %1828 = vmatprep.subr.mxu0 0.0
      %v1829 = vand.u32 %v1798, 4294901760
      %1830 = vmatpush1.msra.mxu0 %v1829
      %1831 = vmatprep.subr.mxu0 0.0
      %v1832 = vand.u32 %v1797, 4294901760
      %1833 = vmatpush1.msra.mxu0 %v1832
      %1834 = vmatprep.subr.mxu0 0.0
      %v1835 = vand.u32 %v1796, 4294901760
      %1836 = vmatpush1.msra.mxu0 %v1835
      %1837 = vmatprep.subr.mxu0 0.0
      %v1838 = vand.u32 %v1795, 4294901760
      %1839 = vmatpush1.msra.mxu0 %v1838
      %1840 = vmatprep.subr.mxu0 0.0
      %v1841 = vand.u32 %v1794, 4294901760
      %1842 = vmatpush1.msra.mxu0 %v1841
      %1843 = vmatprep.subr.mxu0 0.0
      %v1844 = vand.u32 %v1793, 4294901760
      %1845 = vmatpush1.msra.mxu0 %v1844
      %1846 = vmatprep.subr.mxu0 0.0
      %v1847 = vand.u32 %v1792, 4294901760
      %1848 = vmatpush1.msra.mxu0 %v1847
      %1849 = vmatprep.subr.mxu0 0.0
      %v1850 = vand.u32 %v1791, 4294901760
      %1851 = vmatpush1.msra.mxu0 %v1850
      %1852 = vmatprep.subr.mxu0 0.0
      %1853 = vmatpush2.msra.mxu0 0.0
      %1854 = vmatprep.subr.mxu0 0.0
      %1855 = vmatpush2.msra.mxu0 0.0
      %1856 = vmatprep.subr.mxu0 0.0
      %1857 = vmatpush2.msra.mxu0 0.0
      %1858 = vmatprep.subr.mxu0 0.0
      %1859 = vmatpush2.msra.mxu0 0.0
      %1860 = vmatprep.subr.mxu0 0.0
      %1861 = vmatpush2.msra.mxu0 0.0
      %1862 = vmatprep.subr.mxu0 0.0
      %1863 = vmatpush2.msra.mxu0 0.0
      %1864 = vmatprep.subr.mxu0 0.0
      %1865 = vmatpush2.msra.mxu0 0.0
      %1866 = vmatprep.subr.mxu0 0.0
      %1867 = vmatpush2.msra.mxu0 0.0
      %1868 = vmatprep.subr.mxu0 0.0
      %1869 = vmatpush2.msra.mxu0 0.0
      %1870 = vmatprep.subr.mxu0 0.0
      %1871 = vmatpush2.msra.mxu0 0.0
      %1872 = vmatprep.subr.mxu0 0.0
      %1873 = vmatpush2.msra.mxu0 0.0
      %1874 = vmatprep.subr.mxu0 0.0
      %1875 = vmatpush2.msra.mxu0 0.0
      %1876 = vmatprep.subr.mxu0 0.0
      %1877 = vmatpush2.msra.mxu0 0.0
      %1878 = vmatprep.subr.mxu0 0.0
      %1879 = vmatpush2.msra.mxu0 0.0
      %1880 = vmatprep.subr.mxu0 0.0
      %1881 = vmatpush2.msra.mxu0 0.0
      %1882 = vmatprep.subr.mxu0 0.0
      %1883 = vmatpush2.msra.mxu0 0.0
      %1884 = vmatprep.mubr.f32.mxu0 0.0
      %v1885 = vand.u32 %v1807, 4294901760
      %v1886 = vsub.f32 %v1807, %v1885
      %v1887 = vand.u32 %v1886, 4294901760
      %v1888 = vsub.f32 %v1886, %v1887
      %v1889 = vand.u32 %v1888, 4294901760
      %1890 = vmatmul.mubr.f32.gmra.mxu0 %v1889
      %v1891 = vpop.f32.mrf.mxu0
      %v1892 = vadd.f32 %v1804, %v1891
      %v1893 = vpop.f32.mrf.mxu0
      %1894 = vmatprep.mubr.f32.mxu0 0.0
      %v1895 = vand.u32 %v1810, 4294901760
      %v1896 = vsub.f32 %v1810, %v1895
      %v1897 = vand.u32 %v1896, 4294901760
      %v1898 = vsub.f32 %v1896, %v1897
      %v1899 = vand.u32 %v1898, 4294901760
      %1900 = vmatmul.mubr.f32.gmra.mxu0 %v1899
      %v1901 = vpop.f32.mrf.mxu0
      %v1902 = vadd.f32 %v1804, %v1901
      %v1903 = vpop.f32.mrf.mxu0
      %1904 = vdwg.mxu0
      %1905 = vmatprep.subr.mxu0 0.0
      %1906 = vmatpush1.msra.mxu0 0.0
      %1907 = vmatprep.subr.mxu0 0.0
      %1908 = vmatpush1.msra.mxu0 0.0
      %1909 = vmatprep.subr.mxu0 0.0
      %1910 = vmatpush1.msra.mxu0 0.0
      %1911 = vmatprep.subr.mxu0 0.0
      %1912 = vmatpush1.msra.mxu0 0.0
      %1913 = vmatprep.subr.mxu0 0.0
      %1914 = vmatpush1.msra.mxu0 0.0
      %1915 = vmatprep.subr.mxu0 0.0
      %1916 = vmatpush1.msra.mxu0 0.0
      %1917 = vmatprep.subr.mxu0 0.0
      %1918 = vmatpush1.msra.mxu0 0.0
      %1919 = vmatprep.subr.mxu0 0.0
      %1920 = vmatpush1.msra.mxu0 0.0
      %1921 = vmatprep.subr.mxu0 0.0
      %v1922 = vand.u32 %v1798, 4294901760
      %v1923 = vsub.f32 %v1798, %v1922
      %v1924 = vand.u32 %v1923, 4294901760
      %v1925 = vsub.f32 %v1923, %v1924
      %v1926 = vand.u32 %v1925, 4294901760
      %1927 = vmatpush1.msra.mxu0 %v1926
      %1928 = vmatprep.subr.mxu0 0.0
      %v1929 = vand.u32 %v1797, 4294901760
      %v1930 = vsub.f32 %v1797, %v1929
      %v1931 = vand.u32 %v1930, 4294901760
      %v1932 = vsub.f32 %v1930, %v1931
      %v1933 = vand.u32 %v1932, 4294901760
      %1934 = vmatpush1.msra.mxu0 %v1933
      %1935 = vmatprep.subr.mxu0 0.0
      %v1936 = vand.u32 %v1796, 4294901760
      %v1937 = vsub.f32 %v1796, %v1936
      %v1938 = vand.u32 %v1937, 4294901760
      %v1939 = vsub.f32 %v1937, %v1938
      %v1940 = vand.u32 %v1939, 4294901760
      %1941 = vmatpush1.msra.mxu0 %v1940
      %1942 = vmatprep.subr.mxu0 0.0
      %v1943 = vand.u32 %v1795, 4294901760
      %v1944 = vsub.f32 %v1795, %v1943
      %v1945 = vand.u32 %v1944, 4294901760
      %v1946 = vsub.f32 %v1944, %v1945
      %v1947 = vand.u32 %v1946, 4294901760
      %1948 = vmatpush1.msra.mxu0 %v1947
      %1949 = vmatprep.subr.mxu0 0.0
      %v1950 = vand.u32 %v1794, 4294901760
      %v1951 = vsub.f32 %v1794, %v1950
      %v1952 = vand.u32 %v1951, 4294901760
      %v1953 = vsub.f32 %v1951, %v1952
      %v1954 = vand.u32 %v1953, 4294901760
      %1955 = vmatpush1.msra.mxu0 %v1954
      %1956 = vmatprep.subr.mxu0 0.0
      %v1957 = vand.u32 %v1793, 4294901760
      %v1958 = vsub.f32 %v1793, %v1957
      %v1959 = vand.u32 %v1958, 4294901760
      %v1960 = vsub.f32 %v1958, %v1959
      %v1961 = vand.u32 %v1960, 4294901760
      %1962 = vmatpush1.msra.mxu0 %v1961
      %1963 = vmatprep.subr.mxu0 0.0
      %v1964 = vand.u32 %v1792, 4294901760
      %v1965 = vsub.f32 %v1792, %v1964
      %v1966 = vand.u32 %v1965, 4294901760
      %v1967 = vsub.f32 %v1965, %v1966
      %v1968 = vand.u32 %v1967, 4294901760
      %1969 = vmatpush1.msra.mxu0 %v1968
      %1970 = vmatprep.subr.mxu0 0.0
      %v1971 = vand.u32 %v1791, 4294901760
      %v1972 = vsub.f32 %v1791, %v1971
      %v1973 = vand.u32 %v1972, 4294901760
      %v1974 = vsub.f32 %v1972, %v1973
      %v1975 = vand.u32 %v1974, 4294901760
      %1976 = vmatpush1.msra.mxu0 %v1975
      %1977 = vmatprep.subr.mxu0 0.0
      %1978 = vmatpush2.msra.mxu0 0.0
      %1979 = vmatprep.subr.mxu0 0.0
      %1980 = vmatpush2.msra.mxu0 0.0
      %1981 = vmatprep.subr.mxu0 0.0
      %1982 = vmatpush2.msra.mxu0 0.0
      %1983 = vmatprep.subr.mxu0 0.0
      %1984 = vmatpush2.msra.mxu0 0.0
      %1985 = vmatprep.subr.mxu0 0.0
      %1986 = vmatpush2.msra.mxu0 0.0
      %1987 = vmatprep.subr.mxu0 0.0
      %1988 = vmatpush2.msra.mxu0 0.0
      %1989 = vmatprep.subr.mxu0 0.0
      %1990 = vmatpush2.msra.mxu0 0.0
      %1991 = vmatprep.subr.mxu0 0.0
      %1992 = vmatpush2.msra.mxu0 0.0
      %1993 = vmatprep.subr.mxu0 0.0
      %1994 = vmatpush2.msra.mxu0 0.0
      %1995 = vmatprep.subr.mxu0 0.0
      %1996 = vmatpush2.msra.mxu0 0.0
      %1997 = vmatprep.subr.mxu0 0.0
      %1998 = vmatpush2.msra.mxu0 0.0
      %1999 = vmatprep.subr.mxu0 0.0
      %2000 = vmatpush2.msra.mxu0 0.0
      %2001 = vmatprep.subr.mxu0 0.0
      %2002 = vmatpush2.msra.mxu0 0.0
      %2003 = vmatprep.subr.mxu0 0.0
      %2004 = vmatpush2.msra.mxu0 0.0
      %2005 = vmatprep.subr.mxu0 0.0
      %2006 = vmatpush2.msra.mxu0 0.0
      %2007 = vmatprep.subr.mxu0 0.0
      %2008 = vmatpush2.msra.mxu0 0.0
      %2009 = vmatprep.mubr.f32.mxu0 0.0
      %v2010 = vand.u32 %v1807, 4294901760
      %2011 = vmatmul.mubr.f32.gmra.mxu0 %v2010
      %v2012 = vpop.f32.mrf.mxu0
      %v2013 = vadd.f32 %v1892, %v2012
      %v2014 = vpop.f32.mrf.mxu0
      %2015 = vmatprep.mubr.f32.mxu0 0.0
      %v2016 = vand.u32 %v1810, 4294901760
      %2017 = vmatmul.mubr.f32.gmra.mxu0 %v2016
      %v2018 = vpop.f32.mrf.mxu0
      %v2019 = vadd.f32 %v1902, %v2018
      %v2020 = vpop.f32.mrf.mxu0
      %2021 = vdwg.mxu0
      %2022 = vmatprep.subr.mxu0 0.0
      %2023 = vmatpush1.msra.mxu0 0.0
      %2024 = vmatprep.subr.mxu0 0.0
      %2025 = vmatpush1.msra.mxu0 0.0
      %2026 = vmatprep.subr.mxu0 0.0
      %2027 = vmatpush1.msra.mxu0 0.0
      %2028 = vmatprep.subr.mxu0 0.0
      %2029 = vmatpush1.msra.mxu0 0.0
      %2030 = vmatprep.subr.mxu0 0.0
      %2031 = vmatpush1.msra.mxu0 0.0
      %2032 = vmatprep.subr.mxu0 0.0
      %2033 = vmatpush1.msra.mxu0 0.0
      %2034 = vmatprep.subr.mxu0 0.0
      %2035 = vmatpush1.msra.mxu0 0.0
      %2036 = vmatprep.subr.mxu0 0.0
      %2037 = vmatpush1.msra.mxu0 0.0
      %2038 = vmatprep.subr.mxu0 0.0
      %v2039 = vand.u32 %v1798, 4294901760
      %v2040 = vsub.f32 %v1798, %v2039
      %2041 = vmatpush1.msra.mxu0 %v2040
      %2042 = vmatprep.subr.mxu0 0.0
      %v2043 = vand.u32 %v1797, 4294901760
      %v2044 = vsub.f32 %v1797, %v2043
      %2045 = vmatpush1.msra.mxu0 %v2044
      %2046 = vmatprep.subr.mxu0 0.0
      %v2047 = vand.u32 %v1796, 4294901760
      %v2048 = vsub.f32 %v1796, %v2047
      %2049 = vmatpush1.msra.mxu0 %v2048
      %2050 = vmatprep.subr.mxu0 0.0
      %v2051 = vand.u32 %v1795, 4294901760
      %v2052 = vsub.f32 %v1795, %v2051
      %2053 = vmatpush1.msra.mxu0 %v2052
      %2054 = vmatprep.subr.mxu0 0.0
      %v2055 = vand.u32 %v1794, 4294901760
      %v2056 = vsub.f32 %v1794, %v2055
      %2057 = vmatpush1.msra.mxu0 %v2056
      %2058 = vmatprep.subr.mxu0 0.0
      %v2059 = vand.u32 %v1793, 4294901760
      %v2060 = vsub.f32 %v1793, %v2059
      %2061 = vmatpush1.msra.mxu0 %v2060
      %2062 = vmatprep.subr.mxu0 0.0
      %v2063 = vand.u32 %v1792, 4294901760
      %v2064 = vsub.f32 %v1792, %v2063
      %2065 = vmatpush1.msra.mxu0 %v2064
      %2066 = vmatprep.subr.mxu0 0.0
      %v2067 = vand.u32 %v1791, 4294901760
      %v2068 = vsub.f32 %v1791, %v2067
      %2069 = vmatpush1.msra.mxu0 %v2068
      %2070 = vmatprep.subr.mxu0 0.0
      %2071 = vmatpush2.msra.mxu0 0.0
      %2072 = vmatprep.subr.mxu0 0.0
      %2073 = vmatpush2.msra.mxu0 0.0
      %2074 = vmatprep.subr.mxu0 0.0
      %2075 = vmatpush2.msra.mxu0 0.0
      %2076 = vmatprep.subr.mxu0 0.0
      %2077 = vmatpush2.msra.mxu0 0.0
      %2078 = vmatprep.subr.mxu0 0.0
      %2079 = vmatpush2.msra.mxu0 0.0
      %2080 = vmatprep.subr.mxu0 0.0
      %2081 = vmatpush2.msra.mxu0 0.0
      %2082 = vmatprep.subr.mxu0 0.0
      %2083 = vmatpush2.msra.mxu0 0.0
      %2084 = vmatprep.subr.mxu0 0.0
      %2085 = vmatpush2.msra.mxu0 0.0
      %2086 = vmatprep.subr.mxu0 0.0
      %2087 = vmatpush2.msra.mxu0 0.0
      %2088 = vmatprep.subr.mxu0 0.0
      %2089 = vmatpush2.msra.mxu0 0.0
      %2090 = vmatprep.subr.mxu0 0.0
      %2091 = vmatpush2.msra.mxu0 0.0
      %2092 = vmatprep.subr.mxu0 0.0
      %2093 = vmatpush2.msra.mxu0 0.0
      %2094 = vmatprep.subr.mxu0 0.0
      %2095 = vmatpush2.msra.mxu0 0.0
      %2096 = vmatprep.subr.mxu0 0.0
      %2097 = vmatpush2.msra.mxu0 0.0
      %2098 = vmatprep.subr.mxu0 0.0
      %2099 = vmatpush2.msra.mxu0 0.0
      %2100 = vmatprep.subr.mxu0 0.0
      %2101 = vmatpush2.msra.mxu0 0.0
      %2102 = vmatprep.mubr.f32.mxu0 0.0
      %v2103 = vand.u32 %v1807, 4294901760
      %v2104 = vsub.f32 %v1807, %v2103
      %2105 = vmatmul.mubr.f32.gmra.mxu0 %v2104
      %v2106 = vpop.f32.mrf.mxu0
      %v2107 = vadd.f32 %v2013, %v2106
      %v2108 = vpop.f32.mrf.mxu0
      %2109 = vmatprep.mubr.f32.mxu0 0.0
      %v2110 = vand.u32 %v1810, 4294901760
      %v2111 = vsub.f32 %v1810, %v2110
      %2112 = vmatmul.mubr.f32.gmra.mxu0 %v2111
      %v2113 = vpop.f32.mrf.mxu0
      %v2114 = vadd.f32 %v2019, %v2113
      %v2115 = vpop.f32.mrf.mxu0
      %2116 = vdwg.mxu0
      %2117 = vmatprep.subr.mxu0 0.0
      %2118 = vmatpush1.msra.mxu0 0.0
      %2119 = vmatprep.subr.mxu0 0.0
      %2120 = vmatpush1.msra.mxu0 0.0
      %2121 = vmatprep.subr.mxu0 0.0
      %2122 = vmatpush1.msra.mxu0 0.0
      %2123 = vmatprep.subr.mxu0 0.0
      %2124 = vmatpush1.msra.mxu0 0.0
      %2125 = vmatprep.subr.mxu0 0.0
      %2126 = vmatpush1.msra.mxu0 0.0
      %2127 = vmatprep.subr.mxu0 0.0
      %2128 = vmatpush1.msra.mxu0 0.0
      %2129 = vmatprep.subr.mxu0 0.0
      %2130 = vmatpush1.msra.mxu0 0.0
      %2131 = vmatprep.subr.mxu0 0.0
      %2132 = vmatpush1.msra.mxu0 0.0
      %2133 = vmatprep.subr.mxu0 0.0
      %v2134 = vand.u32 %v1798, 4294901760
      %2135 = vmatpush1.msra.mxu0 %v2134
      %2136 = vmatprep.subr.mxu0 0.0
      %v2137 = vand.u32 %v1797, 4294901760
      %2138 = vmatpush1.msra.mxu0 %v2137
      %2139 = vmatprep.subr.mxu0 0.0
      %v2140 = vand.u32 %v1796, 4294901760
      %2141 = vmatpush1.msra.mxu0 %v2140
      %2142 = vmatprep.subr.mxu0 0.0
      %v2143 = vand.u32 %v1795, 4294901760
      %2144 = vmatpush1.msra.mxu0 %v2143
      %2145 = vmatprep.subr.mxu0 0.0
      %v2146 = vand.u32 %v1794, 4294901760
      %2147 = vmatpush1.msra.mxu0 %v2146
      %2148 = vmatprep.subr.mxu0 0.0
      %v2149 = vand.u32 %v1793, 4294901760
      %2150 = vmatpush1.msra.mxu0 %v2149
      %2151 = vmatprep.subr.mxu0 0.0
      %v2152 = vand.u32 %v1792, 4294901760
      %2153 = vmatpush1.msra.mxu0 %v2152
      %2154 = vmatprep.subr.mxu0 0.0
      %v2155 = vand.u32 %v1791, 4294901760
      %2156 = vmatpush1.msra.mxu0 %v2155
      %2157 = vmatprep.subr.mxu0 0.0
      %2158 = vmatpush2.msra.mxu0 0.0
      %2159 = vmatprep.subr.mxu0 0.0
      %2160 = vmatpush2.msra.mxu0 0.0
      %2161 = vmatprep.subr.mxu0 0.0
      %2162 = vmatpush2.msra.mxu0 0.0
      %2163 = vmatprep.subr.mxu0 0.0
      %2164 = vmatpush2.msra.mxu0 0.0
      %2165 = vmatprep.subr.mxu0 0.0
      %2166 = vmatpush2.msra.mxu0 0.0
      %2167 = vmatprep.subr.mxu0 0.0
      %2168 = vmatpush2.msra.mxu0 0.0
      %2169 = vmatprep.subr.mxu0 0.0
      %2170 = vmatpush2.msra.mxu0 0.0
      %2171 = vmatprep.subr.mxu0 0.0
      %2172 = vmatpush2.msra.mxu0 0.0
      %2173 = vmatprep.subr.mxu0 0.0
      %2174 = vmatpush2.msra.mxu0 0.0
      %2175 = vmatprep.subr.mxu0 0.0
      %2176 = vmatpush2.msra.mxu0 0.0
      %2177 = vmatprep.subr.mxu0 0.0
      %2178 = vmatpush2.msra.mxu0 0.0
      %2179 = vmatprep.subr.mxu0 0.0
      %2180 = vmatpush2.msra.mxu0 0.0
      %2181 = vmatprep.subr.mxu0 0.0
      %2182 = vmatpush2.msra.mxu0 0.0
      %2183 = vmatprep.subr.mxu0 0.0
      %2184 = vmatpush2.msra.mxu0 0.0
      %2185 = vmatprep.subr.mxu0 0.0
      %2186 = vmatpush2.msra.mxu0 0.0
      %2187 = vmatprep.subr.mxu0 0.0
      %2188 = vmatpush2.msra.mxu0 0.0
      %2189 = vmatprep.mubr.f32.mxu0 0.0
      %v2190 = vand.u32 %v1807, 4294901760
      %v2191 = vsub.f32 %v1807, %v2190
      %v2192 = vand.u32 %v2191, 4294901760
      %2193 = vmatmul.mubr.f32.gmra.mxu0 %v2192
      %v2194 = vpop.f32.mrf.mxu0
      %v2195 = vadd.f32 %v2107, %v2194
      %v2196 = vpop.f32.mrf.mxu0
      %2197 = vmatprep.mubr.f32.mxu0 0.0
      %v2198 = vand.u32 %v1810, 4294901760
      %v2199 = vsub.f32 %v1810, %v2198
      %v2200 = vand.u32 %v2199, 4294901760
      %2201 = vmatmul.mubr.f32.gmra.mxu0 %v2200
      %v2202 = vpop.f32.mrf.mxu0
      %v2203 = vadd.f32 %v2114, %v2202
      %v2204 = vpop.f32.mrf.mxu0
      %2205 = vdwg.mxu0
      %2206 = vmatprep.subr.mxu0 0.0
      %2207 = vmatpush1.msra.mxu0 0.0
      %2208 = vmatprep.subr.mxu0 0.0
      %2209 = vmatpush1.msra.mxu0 0.0
      %2210 = vmatprep.subr.mxu0 0.0
      %2211 = vmatpush1.msra.mxu0 0.0
      %2212 = vmatprep.subr.mxu0 0.0
      %2213 = vmatpush1.msra.mxu0 0.0
      %2214 = vmatprep.subr.mxu0 0.0
      %2215 = vmatpush1.msra.mxu0 0.0
      %2216 = vmatprep.subr.mxu0 0.0
      %2217 = vmatpush1.msra.mxu0 0.0
      %2218 = vmatprep.subr.mxu0 0.0
      %2219 = vmatpush1.msra.mxu0 0.0
      %2220 = vmatprep.subr.mxu0 0.0
      %2221 = vmatpush1.msra.mxu0 0.0
      %2222 = vmatprep.subr.mxu0 0.0
      %v2223 = vand.u32 %v1798, 4294901760
      %v2224 = vsub.f32 %v1798, %v2223
      %v2225 = vand.u32 %v2224, 4294901760
      %2226 = vmatpush1.msra.mxu0 %v2225
      %2227 = vmatprep.subr.mxu0 0.0
      %v2228 = vand.u32 %v1797, 4294901760
      %v2229 = vsub.f32 %v1797, %v2228
      %v2230 = vand.u32 %v2229, 4294901760
      %2231 = vmatpush1.msra.mxu0 %v2230
      %2232 = vmatprep.subr.mxu0 0.0
      %v2233 = vand.u32 %v1796, 4294901760
      %v2234 = vsub.f32 %v1796, %v2233
      %v2235 = vand.u32 %v2234, 4294901760
      %2236 = vmatpush1.msra.mxu0 %v2235
      %2237 = vmatprep.subr.mxu0 0.0
      %v2238 = vand.u32 %v1795, 4294901760
      %v2239 = vsub.f32 %v1795, %v2238
      %v2240 = vand.u32 %v2239, 4294901760
      %2241 = vmatpush1.msra.mxu0 %v2240
      %2242 = vmatprep.subr.mxu0 0.0
      %v2243 = vand.u32 %v1794, 4294901760
      %v2244 = vsub.f32 %v1794, %v2243
      %v2245 = vand.u32 %v2244, 4294901760
      %2246 = vmatpush1.msra.mxu0 %v2245
      %2247 = vmatprep.subr.mxu0 0.0
      %v2248 = vand.u32 %v1793, 4294901760
      %v2249 = vsub.f32 %v1793, %v2248
      %v2250 = vand.u32 %v2249, 4294901760
      %2251 = vmatpush1.msra.mxu0 %v2250
      %2252 = vmatprep.subr.mxu0 0.0
      %v2253 = vand.u32 %v1792, 4294901760
      %v2254 = vsub.f32 %v1792, %v2253
      %v2255 = vand.u32 %v2254, 4294901760
      %2256 = vmatpush1.msra.mxu0 %v2255
      %2257 = vmatprep.subr.mxu0 0.0
      %v2258 = vand.u32 %v1791, 4294901760
      %v2259 = vsub.f32 %v1791, %v2258
      %v2260 = vand.u32 %v2259, 4294901760
      %2261 = vmatpush1.msra.mxu0 %v2260
      %2262 = vmatprep.subr.mxu0 0.0
      %2263 = vmatpush2.msra.mxu0 0.0
      %2264 = vmatprep.subr.mxu0 0.0
      %2265 = vmatpush2.msra.mxu0 0.0
      %2266 = vmatprep.subr.mxu0 0.0
      %2267 = vmatpush2.msra.mxu0 0.0
      %2268 = vmatprep.subr.mxu0 0.0
      %2269 = vmatpush2.msra.mxu0 0.0
      %2270 = vmatprep.subr.mxu0 0.0
      %2271 = vmatpush2.msra.mxu0 0.0
      %2272 = vmatprep.subr.mxu0 0.0
      %2273 = vmatpush2.msra.mxu0 0.0
      %2274 = vmatprep.subr.mxu0 0.0
      %2275 = vmatpush2.msra.mxu0 0.0
      %2276 = vmatprep.subr.mxu0 0.0
      %2277 = vmatpush2.msra.mxu0 0.0
      %2278 = vmatprep.subr.mxu0 0.0
      %2279 = vmatpush2.msra.mxu0 0.0
      %2280 = vmatprep.subr.mxu0 0.0
      %2281 = vmatpush2.msra.mxu0 0.0
      %2282 = vmatprep.subr.mxu0 0.0
      %2283 = vmatpush2.msra.mxu0 0.0
      %2284 = vmatprep.subr.mxu0 0.0
      %2285 = vmatpush2.msra.mxu0 0.0
      %2286 = vmatprep.subr.mxu0 0.0
      %2287 = vmatpush2.msra.mxu0 0.0
      %2288 = vmatprep.subr.mxu0 0.0
      %2289 = vmatpush2.msra.mxu0 0.0
      %2290 = vmatprep.subr.mxu0 0.0
      %2291 = vmatpush2.msra.mxu0 0.0
      %2292 = vmatprep.subr.mxu0 0.0
      %2293 = vmatpush2.msra.mxu0 0.0
      %2294 = vmatprep.mubr.f32.mxu0 0.0
      %v2295 = vand.u32 %v1807, 4294901760
      %2296 = vmatmul.mubr.f32.gmra.mxu0 %v2295
      %v2297 = vpop.f32.mrf.mxu0
      %v2298 = vadd.f32 %v2195, %v2297
      %v2299 = vpop.f32.mrf.mxu0
      %2300 = vmatprep.mubr.f32.mxu0 0.0
      %v2301 = vand.u32 %v1810, 4294901760
      %2302 = vmatmul.mubr.f32.gmra.mxu0 %v2301
      %v2303 = vpop.f32.mrf.mxu0
      %v2304 = vadd.f32 %v2203, %v2303
      %v2305 = vpop.f32.mrf.mxu0
      %2306 = vdwg.mxu0
      %2307 = vmatprep.subr.mxu0 0.0
      %2308 = vmatpush1.msra.mxu0 0.0
      %2309 = vmatprep.subr.mxu0 0.0
      %2310 = vmatpush1.msra.mxu0 0.0
      %2311 = vmatprep.subr.mxu0 0.0
      %2312 = vmatpush1.msra.mxu0 0.0
      %2313 = vmatprep.subr.mxu0 0.0
      %2314 = vmatpush1.msra.mxu0 0.0
      %2315 = vmatprep.subr.mxu0 0.0
      %2316 = vmatpush1.msra.mxu0 0.0
      %2317 = vmatprep.subr.mxu0 0.0
      %2318 = vmatpush1.msra.mxu0 0.0
      %2319 = vmatprep.subr.mxu0 0.0
      %2320 = vmatpush1.msra.mxu0 0.0
      %2321 = vmatprep.subr.mxu0 0.0
      %2322 = vmatpush1.msra.mxu0 0.0
      %2323 = vmatprep.subr.mxu0 0.0
      %v2324 = vand.u32 %v1798, 4294901760
      %2325 = vmatpush1.msra.mxu0 %v2324
      %2326 = vmatprep.subr.mxu0 0.0
      %v2327 = vand.u32 %v1797, 4294901760
      %2328 = vmatpush1.msra.mxu0 %v2327
      %2329 = vmatprep.subr.mxu0 0.0
      %v2330 = vand.u32 %v1796, 4294901760
      %2331 = vmatpush1.msra.mxu0 %v2330
      %2332 = vmatprep.subr.mxu0 0.0
      %v2333 = vand.u32 %v1795, 4294901760
      %2334 = vmatpush1.msra.mxu0 %v2333
      %2335 = vmatprep.subr.mxu0 0.0
      %v2336 = vand.u32 %v1794, 4294901760
      %2337 = vmatpush1.msra.mxu0 %v2336
      %2338 = vmatprep.subr.mxu0 0.0
      %v2339 = vand.u32 %v1793, 4294901760
      %2340 = vmatpush1.msra.mxu0 %v2339
      %2341 = vmatprep.subr.mxu0 0.0
      %v2342 = vand.u32 %v1792, 4294901760
      %2343 = vmatpush1.msra.mxu0 %v2342
      %2344 = vmatprep.subr.mxu0 0.0
      %v2345 = vand.u32 %v1791, 4294901760
      %2346 = vmatpush1.msra.mxu0 %v2345
      %2347 = vmatprep.subr.mxu0 0.0
      %2348 = vmatpush2.msra.mxu0 0.0
      %2349 = vmatprep.subr.mxu0 0.0
      %2350 = vmatpush2.msra.mxu0 0.0
      %2351 = vmatprep.subr.mxu0 0.0
      %2352 = vmatpush2.msra.mxu0 0.0
      %2353 = vmatprep.subr.mxu0 0.0
      %2354 = vmatpush2.msra.mxu0 0.0
      %2355 = vmatprep.subr.mxu0 0.0
      %2356 = vmatpush2.msra.mxu0 0.0
      %2357 = vmatprep.subr.mxu0 0.0
      %2358 = vmatpush2.msra.mxu0 0.0
      %2359 = vmatprep.subr.mxu0 0.0
      %2360 = vmatpush2.msra.mxu0 0.0
      %2361 = vmatprep.subr.mxu0 0.0
      %2362 = vmatpush2.msra.mxu0 0.0
      %2363 = vmatprep.subr.mxu0 0.0
      %2364 = vmatpush2.msra.mxu0 0.0
      %2365 = vmatprep.subr.mxu0 0.0
      %2366 = vmatpush2.msra.mxu0 0.0
      %2367 = vmatprep.subr.mxu0 0.0
      %2368 = vmatpush2.msra.mxu0 0.0
      %2369 = vmatprep.subr.mxu0 0.0
      %2370 = vmatpush2.msra.mxu0 0.0
      %2371 = vmatprep.subr.mxu0 0.0
      %2372 = vmatpush2.msra.mxu0 0.0
      %2373 = vmatprep.subr.mxu0 0.0
      %2374 = vmatpush2.msra.mxu0 0.0
      %2375 = vmatprep.subr.mxu0 0.0
      %2376 = vmatpush2.msra.mxu0 0.0
      %2377 = vmatprep.subr.mxu0 0.0
      %2378 = vmatpush2.msra.mxu0 0.0
      %2379 = vmatprep.mubr.f32.mxu0 0.0
      %v2380 = vand.u32 %v1807, 4294901760
      %2381 = vmatmul.mubr.f32.gmra.mxu0 %v2380
      %v2382 = vpop.f32.mrf.mxu0
      %v2383 = vadd.f32 %v2298, %v2382
      %v2384 = vpop.f32.mrf.mxu0
      %2385 = vmatprep.mubr.f32.mxu0 0.0
      %v2386 = vand.u32 %v1810, 4294901760
      %2387 = vmatmul.mubr.f32.gmra.mxu0 %v2386
      %v2388 = vpop.f32.mrf.mxu0
      %v2389 = vadd.f32 %v2304, %v2388
      %v2390 = vpop.f32.mrf.mxu0
      %2391 = vdwg.mxu0
      %v2392 = vld [vmem:[%s11] sm:$0x1]
      %v2393 = vld [vmem:[%s12] sm:$0x1]
      %v2394 = vsel %vm457, %v2383, 0.0
      %2395 = vadd.xlane.f32.xlu0 %v2394
      %v2396 = vpop.xlane.xlu0 %2395
      %v2397 = vsel %vm457, %v2389, 0.0
      %2398 = vadd.xlane.f32.xlu0 %v2397
      %v2399 = vpop.xlane.xlu0 %2398
      %v2400 = vrcp.pop 32.0
      %v2401 = vmul.f32 %v2396, %v2400
      %v2402 = vmul.f32 %v2399, %v2400
      %v2403 = vsub.f32 %v2383, %v2401
      %v2404 = vsub.f32 %v2389, %v2402
      %v2405 = vmul.f32 %v2403, %v2403
      %v2406 = vmul.f32 %v2404, %v2404
      %v2407 = vsel %vm457, %v2405, 0.0
      %2408 = vadd.xlane.f32.xlu0 %v2407
      %v2409 = vpop.xlane.xlu0 %2408
      %v2410 = vsel %vm457, %v2406, 0.0
      %2411 = vadd.xlane.f32.xlu0 %v2410
      %v2412 = vpop.xlane.xlu0 %2411
      %v2413 = vmul.f32 %v2409, %v2400
      %v2414 = vmul.f32 %v2412, %v2400
      %v2415 = vadd.f32 %v2413, 1e-05
      %v2416 = vadd.f32 %v2414, 1e-05
      %v2417 = vrsqrt.pop %v2415
      %v2418 = vrsqrt.pop %v2416
      %v2419 = vmul.f32 %v2403, %v2417
      %v2420 = vmul.f32 %v2404, %v2418
      %v2422 = vlaneseq
      %v2423 = vshrl.u32 %v2422, 7
      %v2424 = vsub.s32 0, %v2423
      %v2425 = vrot.slane %v2392, %v2424
      %v2427 = vmul.f32 %v2419, %v2425
      %v2428 = vmul.f32 %v2420, %v2425
      %v2430 = vlaneseq
      %v2431 = vshrl.u32 %v2430, 7
      %v2432 = vsub.s32 0, %v2431
      %v2433 = vrot.slane %v2393, %v2432
      %v2435 = vadd.f32 %v2427, %v2433
      %v2436 = vadd.f32 %v2428, %v2433
      %2437 = vst.msk [vmem:[%s442] sm:$0xff] %vm457, %v2435
      %2438 = vst.msk [vmem:[%s442 + $0x8] sm:$0xff] %vm457, %v2436
      %s2439 = smul.u32 2, %s24
      %p2440 = scmp.lt.s32.totalorder %s2439, 9
      %s2441 = scalar_select %p2440, %s2439, 9
      %s2442 = smul.addr %s2441, 8
      %s2443 = scalar_lea.vmem %s13, %s2442
      // Predicated region
      $region73: #{tpu_custom_call.1} parent=71 // pred_check
        %p2444 = pneg %p320
      $region74: #{tpu_custom_call.1} parent=71 // pred_check_branch
        %2446 = sbr.rel (%p2444) target = $region76
      $region75: #{tpu_custom_call.1} parent=71 // pred_region
        %s2447 = smul.u32 2, %s24
      $region76: #{tpu_custom_call.1} parent=71 // pred_fallthru
        _
    $region72: #{tpu_custom_call.1} parent=5 // pred_fallthru
      _
    %p2448 = scmp.le.s32.totalorder 2, %s19
    // Predicated region
    $region77: #{tpu_custom_call.1} parent=5 // pred_check
      %p2449 = pneg %p2448
    $region78: #{tpu_custom_call.1} parent=5 // pred_check_branch
      %2451 = sbr.rel (%p2449) target = $region80
    $region79: #{tpu_custom_call.1} parent=5 // pred_region
      %s2452 = ssub.s32 %s19, 2
      // Predicated region
      $region81: #{tpu_custom_call.1} parent=79 // pred_check
        %p2453 = pneg %p326
      $region82: #{tpu_custom_call.1} parent=79 // pred_check_branch
        %2455 = sbr.rel (%p2453) target = $region84
      $region83: #{tpu_custom_call.1} parent=79 // pred_region
        %s2456 = smul.u32 2, %s25
        %p2457 = scmp.lt.s32.totalorder %s2456, 9
        %s2458 = scalar_select %p2457, %s2456, 9
        %s2459 = smul.addr %s2458, 8
        %s2460 = scalar_lea.vmem %s13, %s2459
      $region84: #{tpu_custom_call.1} parent=79 // pred_fallthru
        _
    $region80: #{tpu_custom_call.1} parent=5 // pred_fallthru
      _
  $region6: #{tpu_custom_call.1} parent=0 // loop_footer
    %s23 = sadd.s32 1, %s19
  $region7: #{tpu_custom_call.1} parent=0 // loop_footer_branch
    %18 = sbr.rel target = $region3
  $region8: #{tpu_custom_call.1} parent=0 // loop_exit
    _

</llo_original>
